<compile_context>
chip_gen: v7x
topology: tpu7x:2x2x1
jax: 0.10.0
libtpu: 0.0.40
codegen_flags: <defaults>
</compile_context>

<pallas_src>
import jax
import jax.numpy as jnp
from jax.experimental import pallas as pl
from jax.experimental.pallas import tpu as pltpu

D_LAYERS = 8
W = 256
INPUT_CH = 3
INPUT_CH_VIEWS = 3
OUTPUT_CH = 4
SKIPS = (4,)
PAD_IN = 128     # lane-padded width of x / fused layer-0+skip weight
PAD_OUT = 128    # lane-padded width of the output layer
MAX_TILE = 512   # rows of x processed per grid step (cap)


def nerf_kernel(x_ref, w0s_ref, *refs):
    # refs = w_h[1..7] (7), b[0..7] (8), w_out, b_out, o_ref
    o_ref = refs[-1]
    w_h = refs[0:D_LAYERS - 1]
    b = refs[D_LAYERS - 1:2 * D_LAYERS - 1]
    w_out = refs[2 * D_LAYERS - 1]
    b_out = refs[2 * D_LAYERS]

    x_bf = x_ref[...]                                     # (TILE, PAD_IN) bf16

    # Fused layer-0 + skip matmul: cols 0:W are layer-0 pre-activations,
    # cols W:2W are the "pts" contribution to the skip layer (layer 5).
    z01 = jnp.dot(x_bf, w0s_ref[...],
                  preferred_element_type=jnp.float32)     # (TILE, 2W) f32
    skip_pre = z01[:, W:]                                 # pts @ W5[:3]  (f32)
    h = jnp.maximum(z01[:, :W] + b[0][...], 0.0)          # f32

    # Layers 1..7: bf16 into the MXU, f32 accumulate, f32 bias/ReLU on VPU.
    for i in range(1, D_LAYERS):
        z = jnp.dot(h.astype(jnp.bfloat16), w_h[i - 1][...],
                    preferred_element_type=jnp.float32) + b[i][...]
        if (i - 1) in SKIPS:
            # Layer i consumes concat([input_pts, h]); add the pts part here.
            z = z + skip_pre
        h = jnp.maximum(z, 0.0)

    # output_linear: Linear(W, output_ch), lane-padded to PAD_OUT.
    o_ref[...] = (jnp.dot(h.astype(jnp.bfloat16), w_out[...],
                          preferred_element_type=jnp.float32)
                  + b_out[...]).astype(o_ref.dtype)


def make_params(key):
    """Deterministic PyTorch-Linear-style init (uniform +/- 1/sqrt(fan_in))."""
    ks = jax.random.split(key, 2 * D_LAYERS + 2)
    in_dims = [INPUT_CH] + [W if i not in SKIPS else W + INPUT_CH
                            for i in range(D_LAYERS - 1)]
    pts_w, pts_b = [], []
    for i, din in enumerate(in_dims):
        s = 1.0 / jnp.sqrt(jnp.float32(din))
        pts_w.append(jax.random.uniform(ks[2 * i], (din, W), jnp.float32, -s, s))
        pts_b.append(jax.random.uniform(ks[2 * i + 1], (W,), jnp.float32, -s, s))
    s = 1.0 / jnp.sqrt(jnp.float32(W))
    out_w = jax.random.uniform(ks[-2], (W, OUTPUT_CH), jnp.float32, -s, s)
    out_b = jax.random.uniform(ks[-1], (OUTPUT_CH,), jnp.float32, -s, s)
    return pts_w, pts_b, out_w, out_b


def pad_params(pts_w, pts_b, out_w, out_b):
    """One-time weight prep (hoisted out of the per-call path).

    Returns bf16 MXU weights + f32 biases laid out for the kernel.
    """
    skip_layer = SKIPS[0] + 1  # module index whose fan-in is W + input_ch

    # Fused layer-0 + skip weight: (PAD_IN, 2W); rows >= INPUT_CH are zero.
    w0s = jnp.zeros((PAD_IN, 2 * W), jnp.float32)
    w0s = w0s.at[:INPUT_CH, :W].set(pts_w[0])
    w0s = w0s.at[:INPUT_CH, W:].set(pts_w[skip_layer][:INPUT_CH])
    w0s = w0s.astype(jnp.bfloat16)

    w_h = []
    for i in range(1, D_LAYERS):
        wi = pts_w[i]
        if i == skip_layer:
            wi = wi[INPUT_CH:]            # (W, W) "h" rows of the skip layer
        w_h.append(wi.astype(jnp.bfloat16))

    b = tuple(bb.reshape(1, W).astype(jnp.float32) for bb in pts_b)

    wout_p = (jnp.zeros((W, PAD_OUT), jnp.float32)
              .at[:, :OUTPUT_CH].set(out_w).astype(jnp.bfloat16))
    bout_p = jnp.zeros((1, PAD_OUT), jnp.float32).at[0, :OUTPUT_CH].set(out_b)
    return w0s, tuple(w_h), b, wout_p, bout_p


@jax.jit
def nerf_pallas(x, w0s, w_h, b, wout, bout):
    N = x.shape[0]
    # Adaptive row tile: up to MAX_TILE, always a multiple of 8; pad the tail.
    tile = min(MAX_TILE, ((N + 7) // 8) * 8)
    n_pad = ((N + tile - 1) // tile) * tile

    x_pad = jnp.zeros((n_pad, PAD_IN), jnp.bfloat16)
    x_pad = x_pad.at[:N, :INPUT_CH + INPUT_CH_VIEWS].set(
        x.astype(jnp.bfloat16))

    args = [x_pad, w0s] + list(w_h) + list(b) + [wout, bout]

    def full_spec(a):
        # Whole array resident in VMEM, same block every grid step.
        return pl.BlockSpec(a.shape, lambda i: (0, 0))

    in_specs = ([pl.BlockSpec((tile, PAD_IN), lambda i: (i, 0))]
                + [full_spec(a) for a in args[1:]])

    out = pl.pallas_call(
        nerf_kernel,
        out_shape=jax.ShapeDtypeStruct((n_pad, PAD_OUT), jnp.float32),
        grid=(n_pad // tile,),
        in_specs=in_specs,
        out_specs=pl.BlockSpec((tile, PAD_OUT), lambda i: (i, 0)),
        compiler_params=pltpu.CompilerParams(
            dimension_semantics=("parallel",)),
    )(*args)
    return out[:N, :OUTPUT_CH]


def nerf_ref(x, pts_w, pts_b, out_w, out_b):
    """Plain-JAX mirror of the PyTorch forward (use_viewdirs=False)."""
    pts = x[:, :INPUT_CH]
    h = pts
    for i in range(D_LAYERS):
        h = jnp.maximum(h @ pts_w[i] + pts_b[i], 0.0)
        if i in SKIPS:
            h = jnp.concatenate([pts, h], axis=-1)
    return h @ out_w + out_b


# TODO(synk): the use_viewdirs=True branch (feature/alpha/rgb heads +
# views_linears) is not exercised by the default module config and is not
# implemented here.

if __name__ == "__main__":
    key = jax.random.PRNGKey(0)
    kx, kp = jax.random.split(key)
    N = 16
    x = jax.random.normal(kx, (N, INPUT_CH + INPUT_CH_VIEWS), jnp.float32)
    pts_w, pts_b, out_w, out_b = make_params(kp)

    # Weight padding/casting done once, reused across calls.
    w0s, w_h, b, wout, bout = pad_params(pts_w, pts_b, out_w, out_b)

    out = nerf_pallas(x, w0s, w_h, b, wout, bout)
    out = jax.block_until_ready(out)

    ref = nerf_ref(x, pts_w, pts_b, out_w, out_b)
    assert out.shape == (N, OUTPUT_CH)
    max_err = float(jnp.max(jnp.abs(out - ref)))
    # bf16 matmul path -> looser tolerance than the f32 reference.
    assert jnp.allclose(out, ref, atol=5e-2, rtol=5e-2), max_err
    print("KERNEL_OK")
</pallas_src>

<mosaic_0001>
module attributes {stable_mosaic.version = 11 : i64} {
  func.func @nerf_kernel(%arg0: i32, %arg1: memref<16x128xbf16, #tpu.memory_space<vmem>>, %arg2: memref<128x512xbf16, #tpu.memory_space<vmem>>, %arg3: memref<256x256xbf16, #tpu.memory_space<vmem>>, %arg4: memref<256x256xbf16, #tpu.memory_space<vmem>>, %arg5: memref<256x256xbf16, #tpu.memory_space<vmem>>, %arg6: memref<256x256xbf16, #tpu.memory_space<vmem>>, %arg7: memref<256x256xbf16, #tpu.memory_space<vmem>>, %arg8: memref<256x256xbf16, #tpu.memory_space<vmem>>, %arg9: memref<256x256xbf16, #tpu.memory_space<vmem>>, %arg10: memref<1x256xf32, #tpu.memory_space<vmem>>, %arg11: memref<1x256xf32, #tpu.memory_space<vmem>>, %arg12: memref<1x256xf32, #tpu.memory_space<vmem>>, %arg13: memref<1x256xf32, #tpu.memory_space<vmem>>, %arg14: memref<1x256xf32, #tpu.memory_space<vmem>>, %arg15: memref<1x256xf32, #tpu.memory_space<vmem>>, %arg16: memref<1x256xf32, #tpu.memory_space<vmem>>, %arg17: memref<1x256xf32, #tpu.memory_space<vmem>>, %arg18: memref<256x128xbf16, #tpu.memory_space<vmem>>, %arg19: memref<1x128xf32, #tpu.memory_space<vmem>>, %arg20: memref<16x128xf32, #tpu.memory_space<vmem>>) attributes {dimension_semantics = [#tpu.dimension_semantics<parallel>], iteration_bounds = array<i64: 1>, scalar_prefetch = 0 : i64, scratch_operands = 0 : i64, tpu.core_type = #tpu.core_type<tc>, window_params = [{transform_indices = @transform_0, window_bounds = array<i64: 16, 128>}, {pipeline_mode = #tpu.pipeline_mode<synchronous>, transform_indices = @transform_1, window_bounds = array<i64: 128, 512>}, {pipeline_mode = #tpu.pipeline_mode<synchronous>, transform_indices = @transform_2, window_bounds = array<i64: 256, 256>}, {pipeline_mode = #tpu.pipeline_mode<synchronous>, transform_indices = @transform_3, window_bounds = array<i64: 256, 256>}, {pipeline_mode = #tpu.pipeline_mode<synchronous>, transform_indices = @transform_4, window_bounds = array<i64: 256, 256>}, {pipeline_mode = #tpu.pipeline_mode<synchronous>, transform_indices = @transform_5, window_bounds = array<i64: 256, 256>}, {pipeline_mode = #tpu.pipeline_mode<synchronous>, transform_indices = @transform_6, window_bounds = array<i64: 256, 256>}, {pipeline_mode = #tpu.pipeline_mode<synchronous>, transform_indices = @transform_7, window_bounds = array<i64: 256, 256>}, {pipeline_mode = #tpu.pipeline_mode<synchronous>, transform_indices = @transform_8, window_bounds = array<i64: 256, 256>}, {pipeline_mode = #tpu.pipeline_mode<synchronous>, transform_indices = @transform_9, window_bounds = array<i64: 1, 256>}, {pipeline_mode = #tpu.pipeline_mode<synchronous>, transform_indices = @transform_10, window_bounds = array<i64: 1, 256>}, {pipeline_mode = #tpu.pipeline_mode<synchronous>, transform_indices = @transform_11, window_bounds = array<i64: 1, 256>}, {pipeline_mode = #tpu.pipeline_mode<synchronous>, transform_indices = @transform_12, window_bounds = array<i64: 1, 256>}, {pipeline_mode = #tpu.pipeline_mode<synchronous>, transform_indices = @transform_13, window_bounds = array<i64: 1, 256>}, {pipeline_mode = #tpu.pipeline_mode<synchronous>, transform_indices = @transform_14, window_bounds = array<i64: 1, 256>}, {pipeline_mode = #tpu.pipeline_mode<synchronous>, transform_indices = @transform_15, window_bounds = array<i64: 1, 256>}, {pipeline_mode = #tpu.pipeline_mode<synchronous>, transform_indices = @transform_16, window_bounds = array<i64: 1, 256>}, {pipeline_mode = #tpu.pipeline_mode<synchronous>, transform_indices = @transform_17, window_bounds = array<i64: 256, 128>}, {pipeline_mode = #tpu.pipeline_mode<synchronous>, transform_indices = @transform_18, window_bounds = array<i64: 1, 128>}, {transform_indices = @transform_19, window_bounds = array<i64: 16, 128>}]} {
    %c0 = arith.constant 0 : index
    %c0_0 = arith.constant 0 : index
    %0 = vector.load %arg1[%c0, %c0_0] : memref<16x128xbf16, #tpu.memory_space<vmem>>, vector<16x128xbf16>
    %c0_1 = arith.constant 0 : index
    %c0_2 = arith.constant 0 : index
    %1 = vector.load %arg2[%c0_1, %c0_2] : memref<128x512xbf16, #tpu.memory_space<vmem>>, vector<128x512xbf16>
    %cst = arith.constant dense<0.000000e+00> : vector<16x512xf32>
    %2 = tpu.matmul %0, %1, %cst {dimension_numbers = #tpu.dot_dimension_numbers<[1], [0], [0], [1], [0, 0, 1, 1], [], []>} : vector<16x128xbf16>, vector<128x512xbf16>, vector<16x512xf32> -> vector<16x512xf32>
    %3 = vector.extract_strided_slice %2 {offsets = [0, 256], sizes = [16, 256], strides = [1, 1]} : vector<16x512xf32> to vector<16x256xf32>
    %4 = vector.extract_strided_slice %2 {offsets = [0, 0], sizes = [16, 256], strides = [1, 1]} : vector<16x512xf32> to vector<16x256xf32>
    %c0_3 = arith.constant 0 : index
    %c0_4 = arith.constant 0 : index
    %5 = vector.load %arg10[%c0_3, %c0_4] : memref<1x256xf32, #tpu.memory_space<vmem>>, vector<1x256xf32>
    %6 = vector.broadcast %5 : vector<1x256xf32> to vector<16x256xf32>
    %7 = arith.addf %4, %6 : vector<16x256xf32>
    %cst_5 = arith.constant 0.000000e+00 : f32
    %8 = vector.broadcast %cst_5 : f32 to vector<16x256xf32>
    %9 = arith.maximumf %7, %8 : vector<16x256xf32>
    %10 = arith.truncf %9 : vector<16x256xf32> to vector<16x256xbf16>
    %c0_6 = arith.constant 0 : index
    %c0_7 = arith.constant 0 : index
    %11 = vector.load %arg3[%c0_6, %c0_7] : memref<256x256xbf16, #tpu.memory_space<vmem>>, vector<256x256xbf16>
    %cst_8 = arith.constant dense<0.000000e+00> : vector<16x256xf32>
    %12 = tpu.matmul %10, %11, %cst_8 {dimension_numbers = #tpu.dot_dimension_numbers<[1], [0], [0], [1], [0, 0, 1, 1], [], []>} : vector<16x256xbf16>, vector<256x256xbf16>, vector<16x256xf32> -> vector<16x256xf32>
    %c0_9 = arith.constant 0 : index
    %c0_10 = arith.constant 0 : index
    %13 = vector.load %arg11[%c0_9, %c0_10] : memref<1x256xf32, #tpu.memory_space<vmem>>, vector<1x256xf32>
    %14 = vector.broadcast %13 : vector<1x256xf32> to vector<16x256xf32>
    %15 = arith.addf %12, %14 : vector<16x256xf32>
    %cst_11 = arith.constant 0.000000e+00 : f32
    %16 = vector.broadcast %cst_11 : f32 to vector<16x256xf32>
    %17 = arith.maximumf %15, %16 : vector<16x256xf32>
    %18 = arith.truncf %17 : vector<16x256xf32> to vector<16x256xbf16>
    %c0_12 = arith.constant 0 : index
    %c0_13 = arith.constant 0 : index
    %19 = vector.load %arg4[%c0_12, %c0_13] : memref<256x256xbf16, #tpu.memory_space<vmem>>, vector<256x256xbf16>
    %cst_14 = arith.constant dense<0.000000e+00> : vector<16x256xf32>
    %20 = tpu.matmul %18, %19, %cst_14 {dimension_numbers = #tpu.dot_dimension_numbers<[1], [0], [0], [1], [0, 0, 1, 1], [], []>} : vector<16x256xbf16>, vector<256x256xbf16>, vector<16x256xf32> -> vector<16x256xf32>
    %c0_15 = arith.constant 0 : index
    %c0_16 = arith.constant 0 : index
    %21 = vector.load %arg12[%c0_15, %c0_16] : memref<1x256xf32, #tpu.memory_space<vmem>>, vector<1x256xf32>
    %22 = vector.broadcast %21 : vector<1x256xf32> to vector<16x256xf32>
    %23 = arith.addf %20, %22 : vector<16x256xf32>
    %cst_17 = arith.constant 0.000000e+00 : f32
    %24 = vector.broadcast %cst_17 : f32 to vector<16x256xf32>
    %25 = arith.maximumf %23, %24 : vector<16x256xf32>
    %26 = arith.truncf %25 : vector<16x256xf32> to vector<16x256xbf16>
    %c0_18 = arith.constant 0 : index
    %c0_19 = arith.constant 0 : index
    %27 = vector.load %arg5[%c0_18, %c0_19] : memref<256x256xbf16, #tpu.memory_space<vmem>>, vector<256x256xbf16>
    %cst_20 = arith.constant dense<0.000000e+00> : vector<16x256xf32>
    %28 = tpu.matmul %26, %27, %cst_20 {dimension_numbers = #tpu.dot_dimension_numbers<[1], [0], [0], [1], [0, 0, 1, 1], [], []>} : vector<16x256xbf16>, vector<256x256xbf16>, vector<16x256xf32> -> vector<16x256xf32>
    %c0_21 = arith.constant 0 : index
    %c0_22 = arith.constant 0 : index
    %29 = vector.load %arg13[%c0_21, %c0_22] : memref<1x256xf32, #tpu.memory_space<vmem>>, vector<1x256xf32>
    %30 = vector.broadcast %29 : vector<1x256xf32> to vector<16x256xf32>
    %31 = arith.addf %28, %30 : vector<16x256xf32>
    %cst_23 = arith.constant 0.000000e+00 : f32
    %32 = vector.broadcast %cst_23 : f32 to vector<16x256xf32>
    %33 = arith.maximumf %31, %32 : vector<16x256xf32>
    %34 = arith.truncf %33 : vector<16x256xf32> to vector<16x256xbf16>
    %c0_24 = arith.constant 0 : index
    %c0_25 = arith.constant 0 : index
    %35 = vector.load %arg6[%c0_24, %c0_25] : memref<256x256xbf16, #tpu.memory_space<vmem>>, vector<256x256xbf16>
    %cst_26 = arith.constant dense<0.000000e+00> : vector<16x256xf32>
    %36 = tpu.matmul %34, %35, %cst_26 {dimension_numbers = #tpu.dot_dimension_numbers<[1], [0], [0], [1], [0, 0, 1, 1], [], []>} : vector<16x256xbf16>, vector<256x256xbf16>, vector<16x256xf32> -> vector<16x256xf32>
    %c0_27 = arith.constant 0 : index
    %c0_28 = arith.constant 0 : index
    %37 = vector.load %arg14[%c0_27, %c0_28] : memref<1x256xf32, #tpu.memory_space<vmem>>, vector<1x256xf32>
    %38 = vector.broadcast %37 : vector<1x256xf32> to vector<16x256xf32>
    %39 = arith.addf %36, %38 : vector<16x256xf32>
    %cst_29 = arith.constant 0.000000e+00 : f32
    %40 = vector.broadcast %cst_29 : f32 to vector<16x256xf32>
    %41 = arith.maximumf %39, %40 : vector<16x256xf32>
    %42 = arith.truncf %41 : vector<16x256xf32> to vector<16x256xbf16>
    %c0_30 = arith.constant 0 : index
    %c0_31 = arith.constant 0 : index
    %43 = vector.load %arg7[%c0_30, %c0_31] : memref<256x256xbf16, #tpu.memory_space<vmem>>, vector<256x256xbf16>
    %cst_32 = arith.constant dense<0.000000e+00> : vector<16x256xf32>
    %44 = tpu.matmul %42, %43, %cst_32 {dimension_numbers = #tpu.dot_dimension_numbers<[1], [0], [0], [1], [0, 0, 1, 1], [], []>} : vector<16x256xbf16>, vector<256x256xbf16>, vector<16x256xf32> -> vector<16x256xf32>
    %c0_33 = arith.constant 0 : index
    %c0_34 = arith.constant 0 : index
    %45 = vector.load %arg15[%c0_33, %c0_34] : memref<1x256xf32, #tpu.memory_space<vmem>>, vector<1x256xf32>
    %46 = vector.broadcast %45 : vector<1x256xf32> to vector<16x256xf32>
    %47 = arith.addf %44, %46 : vector<16x256xf32>
    %48 = arith.addf %47, %3 : vector<16x256xf32>
    %cst_35 = arith.constant 0.000000e+00 : f32
    %49 = vector.broadcast %cst_35 : f32 to vector<16x256xf32>
    %50 = arith.maximumf %48, %49 : vector<16x256xf32>
    %51 = arith.truncf %50 : vector<16x256xf32> to vector<16x256xbf16>
    %c0_36 = arith.constant 0 : index
    %c0_37 = arith.constant 0 : index
    %52 = vector.load %arg8[%c0_36, %c0_37] : memref<256x256xbf16, #tpu.memory_space<vmem>>, vector<256x256xbf16>
    %cst_38 = arith.constant dense<0.000000e+00> : vector<16x256xf32>
    %53 = tpu.matmul %51, %52, %cst_38 {dimension_numbers = #tpu.dot_dimension_numbers<[1], [0], [0], [1], [0, 0, 1, 1], [], []>} : vector<16x256xbf16>, vector<256x256xbf16>, vector<16x256xf32> -> vector<16x256xf32>
    %c0_39 = arith.constant 0 : index
    %c0_40 = arith.constant 0 : index
    %54 = vector.load %arg16[%c0_39, %c0_40] : memref<1x256xf32, #tpu.memory_space<vmem>>, vector<1x256xf32>
    %55 = vector.broadcast %54 : vector<1x256xf32> to vector<16x256xf32>
    %56 = arith.addf %53, %55 : vector<16x256xf32>
    %cst_41 = arith.constant 0.000000e+00 : f32
    %57 = vector.broadcast %cst_41 : f32 to vector<16x256xf32>
    %58 = arith.maximumf %56, %57 : vector<16x256xf32>
    %59 = arith.truncf %58 : vector<16x256xf32> to vector<16x256xbf16>
    %c0_42 = arith.constant 0 : index
    %c0_43 = arith.constant 0 : index
    %60 = vector.load %arg9[%c0_42, %c0_43] : memref<256x256xbf16, #tpu.memory_space<vmem>>, vector<256x256xbf16>
    %cst_44 = arith.constant dense<0.000000e+00> : vector<16x256xf32>
    %61 = tpu.matmul %59, %60, %cst_44 {dimension_numbers = #tpu.dot_dimension_numbers<[1], [0], [0], [1], [0, 0, 1, 1], [], []>} : vector<16x256xbf16>, vector<256x256xbf16>, vector<16x256xf32> -> vector<16x256xf32>
    %c0_45 = arith.constant 0 : index
    %c0_46 = arith.constant 0 : index
    %62 = vector.load %arg17[%c0_45, %c0_46] : memref<1x256xf32, #tpu.memory_space<vmem>>, vector<1x256xf32>
    %63 = vector.broadcast %62 : vector<1x256xf32> to vector<16x256xf32>
    %64 = arith.addf %61, %63 : vector<16x256xf32>
    %cst_47 = arith.constant 0.000000e+00 : f32
    %65 = vector.broadcast %cst_47 : f32 to vector<16x256xf32>
    %66 = arith.maximumf %64, %65 : vector<16x256xf32>
    %67 = arith.truncf %66 : vector<16x256xf32> to vector<16x256xbf16>
    %c0_48 = arith.constant 0 : index
    %c0_49 = arith.constant 0 : index
    %68 = vector.load %arg18[%c0_48, %c0_49] : memref<256x128xbf16, #tpu.memory_space<vmem>>, vector<256x128xbf16>
    %cst_50 = arith.constant dense<0.000000e+00> : vector<16x128xf32>
    %69 = tpu.matmul %67, %68, %cst_50 {dimension_numbers = #tpu.dot_dimension_numbers<[1], [0], [0], [1], [0, 0, 1, 1], [], []>} : vector<16x256xbf16>, vector<256x128xbf16>, vector<16x128xf32> -> vector<16x128xf32>
    %c0_51 = arith.constant 0 : index
    %c0_52 = arith.constant 0 : index
    %70 = vector.load %arg19[%c0_51, %c0_52] : memref<1x128xf32, #tpu.memory_space<vmem>>, vector<1x128xf32>
    %71 = vector.broadcast %70 : vector<1x128xf32> to vector<16x128xf32>
    %72 = arith.addf %69, %71 : vector<16x128xf32>
    %c0_53 = arith.constant 0 : index
    %c0_54 = arith.constant 0 : index
    %73 = vector.load %arg20[%c0_53, %c0_54] : memref<16x128xf32, #tpu.memory_space<vmem>>, vector<16x128xf32>
    tpu.vector_store %arg20[%c0_53, %c0_54], %72 {strides = array<i32>} : memref<16x128xf32, #tpu.memory_space<vmem>>, vector<16x128xf32>,
    return
  }
  func.func @transform_0(%arg0: i32) -> (i32, i32) {
    %c0_i32 = arith.constant 0 : i32
    %c0_i32_0 = arith.constant 0 : i32
    return %arg0, %c0_i32 : i32, i32
  }
  func.func @transform_1(%arg0: i32) -> (i32, i32) {
    %c0_i32 = arith.constant 0 : i32
    %c0_i32_0 = arith.constant 0 : i32
    %c0_i32_1 = arith.constant 0 : i32
    return %c0_i32, %c0_i32_0 : i32, i32
  }
  func.func @transform_2(%arg0: i32) -> (i32, i32) {
    %c0_i32 = arith.constant 0 : i32
    %c0_i32_0 = arith.constant 0 : i32
    %c0_i32_1 = arith.constant 0 : i32
    return %c0_i32, %c0_i32_0 : i32, i32
  }
  func.func @transform_3(%arg0: i32) -> (i32, i32) {
    %c0_i32 = arith.constant 0 : i32
    %c0_i32_0 = arith.constant 0 : i32
    %c0_i32_1 = arith.constant 0 : i32
    return %c0_i32, %c0_i32_0 : i32, i32
  }
  func.func @transform_4(%arg0: i32) -> (i32, i32) {
    %c0_i32 = arith.constant 0 : i32
    %c0_i32_0 = arith.constant 0 : i32
    %c0_i32_1 = arith.constant 0 : i32
    return %c0_i32, %c0_i32_0 : i32, i32
  }
  func.func @transform_5(%arg0: i32) -> (i32, i32) {
    %c0_i32 = arith.constant 0 : i32
    %c0_i32_0 = arith.constant 0 : i32
    %c0_i32_1 = arith.constant 0 : i32
    return %c0_i32, %c0_i32_0 : i32, i32
  }
  func.func @transform_6(%arg0: i32) -> (i32, i32) {
    %c0_i32 = arith.constant 0 : i32
    %c0_i32_0 = arith.constant 0 : i32
    %c0_i32_1 = arith.constant 0 : i32
    return %c0_i32, %c0_i32_0 : i32, i32
  }
  func.func @transform_7(%arg0: i32) -> (i32, i32) {
    %c0_i32 = arith.constant 0 : i32
    %c0_i32_0 = arith.constant 0 : i32
    %c0_i32_1 = arith.constant 0 : i32
    return %c0_i32, %c0_i32_0 : i32, i32
  }
  func.func @transform_8(%arg0: i32) -> (i32, i32) {
    %c0_i32 = arith.constant 0 : i32
    %c0_i32_0 = arith.constant 0 : i32
    %c0_i32_1 = arith.constant 0 : i32
    return %c0_i32, %c0_i32_0 : i32, i32
  }
  func.func @transform_9(%arg0: i32) -> (i32, i32) {
    %c0_i32 = arith.constant 0 : i32
    %c0_i32_0 = arith.constant 0 : i32
    %c0_i32_1 = arith.constant 0 : i32
    return %c0_i32, %c0_i32_0 : i32, i32
  }
  func.func @transform_10(%arg0: i32) -> (i32, i32) {
    %c0_i32 = arith.constant 0 : i32
    %c0_i32_0 = arith.constant 0 : i32
    %c0_i32_1 = arith.constant 0 : i32
    return %c0_i32, %c0_i32_0 : i32, i32
  }
  func.func @transform_11(%arg0: i32) -> (i32, i32) {
    %c0_i32 = arith.constant 0 : i32
    %c0_i32_0 = arith.constant 0 : i32
    %c0_i32_1 = arith.constant 0 : i32
    return %c0_i32, %c0_i32_0 : i32, i32
  }
  func.func @transform_12(%arg0: i32) -> (i32, i32) {
    %c0_i32 = arith.constant 0 : i32
    %c0_i32_0 = arith.constant 0 : i32
    %c0_i32_1 = arith.constant 0 : i32
    return %c0_i32, %c0_i32_0 : i32, i32
  }
  func.func @transform_13(%arg0: i32) -> (i32, i32) {
    %c0_i32 = arith.constant 0 : i32
    %c0_i32_0 = arith.constant 0 : i32
    %c0_i32_1 = arith.constant 0 : i32
    return %c0_i32, %c0_i32_0 : i32, i32
  }
  func.func @transform_14(%arg0: i32) -> (i32, i32) {
    %c0_i32 = arith.constant 0 : i32
    %c0_i32_0 = arith.constant 0 : i32
    %c0_i32_1 = arith.constant 0 : i32
    return %c0_i32, %c0_i32_0 : i32, i32
  }
  func.func @transform_15(%arg0: i32) -> (i32, i32) {
    %c0_i32 = arith.constant 0 : i32
    %c0_i32_0 = arith.constant 0 : i32
    %c0_i32_1 = arith.constant 0 : i32
    return %c0_i32, %c0_i32_0 : i32, i32
  }
  func.func @transform_16(%arg0: i32) -> (i32, i32) {
    %c0_i32 = arith.constant 0 : i32
    %c0_i32_0 = arith.constant 0 : i32
    %c0_i32_1 = arith.constant 0 : i32
    return %c0_i32, %c0_i32_0 : i32, i32
  }
  func.func @transform_17(%arg0: i32) -> (i32, i32) {
    %c0_i32 = arith.constant 0 : i32
    %c0_i32_0 = arith.constant 0 : i32
    %c0_i32_1 = arith.constant 0 : i32
    return %c0_i32, %c0_i32_0 : i32, i32
  }
  func.func @transform_18(%arg0: i32) -> (i32, i32) {
    %c0_i32 = arith.constant 0 : i32
    %c0_i32_0 = arith.constant 0 : i32
    %c0_i32_1 = arith.constant 0 : i32
    return %c0_i32, %c0_i32_0 : i32, i32
  }
  func.func @transform_19(%arg0: i32) -> (i32, i32) {
    %c0_i32 = arith.constant 0 : i32
    %c0_i32_0 = arith.constant 0 : i32
    return %arg0, %c0_i32 : i32, i32
  }
}

</mosaic_0001>

<llo_original>
// kernel: nerf_pallas.1
$region0: #{nerf_pallas.1}
  #allocation0 [shape = 'u32[]', space=smem, size = 0x4, offset = 0x4, fixed_abs, tag = 'smem constant byte address 0x4 - core index']
  #allocation1 [shape = 'u32[144,128]{1,0:T(1,128)}', space=vmem, size = 0x12000, scoped, tag = 'internal scratch']
  %s0 = inlined_call_operand.vmem [shape: bf16[16,128], index: 0, kind: input, shape index: {}]
  %s1 = inlined_call_operand.hbm [shape: bf16[128,512], index: 1, kind: input, shape index: {}]
  %s2 = inlined_call_operand.hbm [shape: bf16[256,256], index: 2, kind: input, shape index: {}]
  %s3 = inlined_call_operand.hbm [shape: bf16[256,256], index: 3, kind: input, shape index: {}]
  %s4 = inlined_call_operand.hbm [shape: bf16[256,256], index: 4, kind: input, shape index: {}]
  %s5 = inlined_call_operand.hbm [shape: bf16[256,256], index: 5, kind: input, shape index: {}]
  %s6 = inlined_call_operand.hbm [shape: bf16[256,256], index: 6, kind: input, shape index: {}]
  %s7 = inlined_call_operand.hbm [shape: bf16[256,256], index: 7, kind: input, shape index: {}]
  %s8 = inlined_call_operand.hbm [shape: bf16[256,256], index: 8, kind: input, shape index: {}]
  %s9 = inlined_call_operand.vmem [shape: f32[1,256], index: 9, kind: input, shape index: {}]
  %s10 = inlined_call_operand.vmem [shape: f32[1,256], index: 10, kind: input, shape index: {}]
  %s11 = inlined_call_operand.vmem [shape: f32[1,256], index: 11, kind: input, shape index: {}]
  %s12 = inlined_call_operand.vmem [shape: f32[1,256], index: 12, kind: input, shape index: {}]
  %s13 = inlined_call_operand.vmem [shape: f32[1,256], index: 13, kind: input, shape index: {}]
  %s14 = inlined_call_operand.vmem [shape: f32[1,256], index: 14, kind: input, shape index: {}]
  %s15 = inlined_call_operand.vmem [shape: f32[1,256], index: 15, kind: input, shape index: {}]
  %s16 = inlined_call_operand.vmem [shape: f32[1,256], index: 16, kind: input, shape index: {}]
  %s17 = inlined_call_operand.hbm [shape: bf16[256,128], index: 17, kind: input, shape index: {}]
  %s18 = inlined_call_operand.vmem [shape: f32[1,128], index: 18, kind: input, shape index: {}]
  %s19 = inlined_call_operand.vmem [shape: f32[16,128], index: 19, kind: output, shape index: {}]
  %s20 = sld [smem:[#allocation0]]
  $region122: #{nerf_pallas.1} parent=0
    _
  %s22 = ssub.s32 1, %s20
  %s23 = scalar_select 0, %s22, %s20
  $region1: #{nerf_pallas.1} parent=0
    #allocation2 [shape = 'u8[131072]{0}', space=vmem, size = 0x20000, scoped, tag = 'input window, operand 1, single buffered']
    #allocation3 [shape = 's32[1]{0}', space=sflag, size = 0x4, scoped, tag = 'scoped memory for nerf_pallas.1']
    #allocation4 [shape = 'u8[131072]{0}', space=vmem, size = 0x20000, scoped, tag = 'input window, operand 2, single buffered']
    #allocation5 [shape = 's32[1]{0}', space=sflag, size = 0x4, scoped, tag = 'scoped memory for nerf_pallas.1']
    #allocation6 [shape = 'u8[131072]{0}', space=vmem, size = 0x20000, scoped, tag = 'input window, operand 3, single buffered']
    #allocation7 [shape = 'u8[131072]{0}', space=vmem, size = 0x20000, scoped, tag = 'input window, operand 4, single buffered']
    #allocation8 [shape = 's32[1]{0}', space=sflag, size = 0x4, scoped, tag = 'scoped memory for nerf_pallas.1']
    #allocation9 [shape = 'u8[131072]{0}', space=vmem, size = 0x20000, scoped, tag = 'input window, operand 5, single buffered']
    #allocation10 [shape = 'u8[131072]{0}', space=vmem, size = 0x20000, scoped, tag = 'input window, operand 6, single buffered']
    #allocation11 [shape = 's32[1]{0}', space=sflag, size = 0x4, scoped, tag = 'scoped memory for nerf_pallas.1']
    #allocation12 [shape = 'u8[131072]{0}', space=vmem, size = 0x20000, scoped, tag = 'input window, operand 7, single buffered']
    #allocation13 [shape = 'u8[131072]{0}', space=vmem, size = 0x20000, scoped, tag = 'input window, operand 8, single buffered']
    #allocation14 [shape = 's32[1]{0}', space=sflag, size = 0x4, scoped, tag = 'scoped memory for nerf_pallas.1']
    #allocation15 [shape = 'u8[65536]{0}', space=vmem, size = 0x10000, scoped, tag = 'input window, operand 17, single buffered']
    %24 = vsyncpa [#allocation3], 0
    %25 = vsyncpa [#allocation5], 0
    %26 = vsyncpa [#allocation8], 0
    %27 = vsyncpa [#allocation11], 0
    %28 = vsyncpa [#allocation14], 0
    // Predicated region
    $region2: #{nerf_pallas.1} parent=1 // pred_check
      _
    $region3: #{nerf_pallas.1} parent=1 // pred_check_branch
      %30 = sbr.rel (0) target = $region5
    $region4: #{nerf_pallas.1} parent=1 // pred_region
      _
    $region5: #{nerf_pallas.1} parent=1 // pred_fallthru
      _
    // Predicated region
    $region6: #{nerf_pallas.1} parent=1 // pred_check
      _
    $region7: #{nerf_pallas.1} parent=1 // pred_check_branch
      %32 = sbr.rel (0) target = $region9
    $region8: #{nerf_pallas.1} parent=1 // pred_region
      %s34 = ssub.s32 4096, 4096
      %35 = vsyncadd [#allocation3], %s34
      %s36 = sshll.u32 [#allocation2], 4
      %s37 = int_to_ptr.vmem [resolvable:$true] %s36
      %42 = dma.hbm_to_vmem [thread:$0]  %s1, 4096, %s37, [#allocation3], 256, 256, 16
    $region9: #{nerf_pallas.1} parent=1 // pred_fallthru
      _
    // Predicated region
    $region10: #{nerf_pallas.1} parent=1 // pred_check
      _
    $region11: #{nerf_pallas.1} parent=1 // pred_check_branch
      %44 = sbr.rel (0) target = $region13
    $region12: #{nerf_pallas.1} parent=1 // pred_region
      %s46 = ssub.s32 4096, 4096
      %47 = vsyncadd [#allocation5], %s46
      %s48 = sshll.u32 [#allocation4], 4
      %s49 = int_to_ptr.vmem [resolvable:$true] %s48
      %54 = dma.hbm_to_vmem [thread:$0]  %s2, 4096, %s49, [#allocation5], 128, 128, 8
    $region13: #{nerf_pallas.1} parent=1 // pred_fallthru
      _
    // Predicated region
    $region14: #{nerf_pallas.1} parent=1 // pred_check
      _
    $region15: #{nerf_pallas.1} parent=1 // pred_check_branch
      %56 = sbr.rel (0) target = $region17
    $region16: #{nerf_pallas.1} parent=1 // pred_region
      %s58 = ssub.s32 4096, 4096
      %59 = vsyncadd [#allocation5], %s58
      %s60 = sshll.u32 [#allocation6], 4
      %s61 = int_to_ptr.vmem [resolvable:$true] %s60
      %66 = dma.hbm_to_vmem [thread:$0]  %s3, 4096, %s61, [#allocation5], 128, 128, 8
    $region17: #{nerf_pallas.1} parent=1 // pred_fallthru
      _
    // Predicated region
    $region18: #{nerf_pallas.1} parent=1 // pred_check
      _
    $region19: #{nerf_pallas.1} parent=1 // pred_check_branch
      %68 = sbr.rel (0) target = $region21
    $region20: #{nerf_pallas.1} parent=1 // pred_region
      %s70 = ssub.s32 4096, 4096
      %71 = vsyncadd [#allocation8], %s70
      %s72 = sshll.u32 [#allocation7], 4
      %s73 = int_to_ptr.vmem [resolvable:$true] %s72
      %78 = dma.hbm_to_vmem [thread:$0]  %s4, 4096, %s73, [#allocation8], 128, 128, 8
    $region21: #{nerf_pallas.1} parent=1 // pred_fallthru
      _
    // Predicated region
    $region22: #{nerf_pallas.1} parent=1 // pred_check
      _
    $region23: #{nerf_pallas.1} parent=1 // pred_check_branch
      %80 = sbr.rel (0) target = $region25
    $region24: #{nerf_pallas.1} parent=1 // pred_region
      %s82 = ssub.s32 4096, 4096
      %83 = vsyncadd [#allocation8], %s82
      %s84 = sshll.u32 [#allocation9], 4
      %s85 = int_to_ptr.vmem [resolvable:$true] %s84
      %90 = dma.hbm_to_vmem [thread:$0]  %s5, 4096, %s85, [#allocation8], 128, 128, 8
    $region25: #{nerf_pallas.1} parent=1 // pred_fallthru
      _
    // Predicated region
    $region26: #{nerf_pallas.1} parent=1 // pred_check
      _
    $region27: #{nerf_pallas.1} parent=1 // pred_check_branch
      %92 = sbr.rel (0) target = $region29
    $region28: #{nerf_pallas.1} parent=1 // pred_region
      %s94 = ssub.s32 4096, 4096
      %95 = vsyncadd [#allocation11], %s94
      %s96 = sshll.u32 [#allocation10], 4
      %s97 = int_to_ptr.vmem [resolvable:$true] %s96
      %102 = dma.hbm_to_vmem [thread:$0]  %s6, 4096, %s97, [#allocation11], 128, 128, 8
    $region29: #{nerf_pallas.1} parent=1 // pred_fallthru
      _
    // Predicated region
    $region30: #{nerf_pallas.1} parent=1 // pred_check
      _
    $region31: #{nerf_pallas.1} parent=1 // pred_check_branch
      %104 = sbr.rel (0) target = $region33
    $region32: #{nerf_pallas.1} parent=1 // pred_region
      %s106 = ssub.s32 4096, 4096
      %107 = vsyncadd [#allocation11], %s106
      %s108 = sshll.u32 [#allocation12], 4
      %s109 = int_to_ptr.vmem [resolvable:$true] %s108
      %114 = dma.hbm_to_vmem [thread:$0]  %s7, 4096, %s109, [#allocation11], 128, 128, 8
    $region33: #{nerf_pallas.1} parent=1 // pred_fallthru
      _
    // Predicated region
    $region34: #{nerf_pallas.1} parent=1 // pred_check
      _
    $region35: #{nerf_pallas.1} parent=1 // pred_check_branch
      %116 = sbr.rel (0) target = $region37
    $region36: #{nerf_pallas.1} parent=1 // pred_region
      %s118 = ssub.s32 4096, 4096
      %119 = vsyncadd [#allocation14], %s118
      %s120 = sshll.u32 [#allocation13], 4
      %s121 = int_to_ptr.vmem [resolvable:$true] %s120
      %126 = dma.hbm_to_vmem [thread:$0]  %s8, 4096, %s121, [#allocation14], 128, 128, 8
    $region37: #{nerf_pallas.1} parent=1 // pred_fallthru
      _
    // Predicated region
    $region38: #{nerf_pallas.1} parent=1 // pred_check
      _
    $region39: #{nerf_pallas.1} parent=1 // pred_check_branch
      %128 = sbr.rel (0) target = $region41
    $region40: #{nerf_pallas.1} parent=1 // pred_region
      _
    $region41: #{nerf_pallas.1} parent=1 // pred_fallthru
      _
    // Predicated region
    $region42: #{nerf_pallas.1} parent=1 // pred_check
      _
    $region43: #{nerf_pallas.1} parent=1 // pred_check_branch
      %130 = sbr.rel (0) target = $region45
    $region44: #{nerf_pallas.1} parent=1 // pred_region
      _
    $region45: #{nerf_pallas.1} parent=1 // pred_fallthru
      _
    // Predicated region
    $region46: #{nerf_pallas.1} parent=1 // pred_check
      _
    $region47: #{nerf_pallas.1} parent=1 // pred_check_branch
      %132 = sbr.rel (0) target = $region49
    $region48: #{nerf_pallas.1} parent=1 // pred_region
      _
    $region49: #{nerf_pallas.1} parent=1 // pred_fallthru
      _
    // Predicated region
    $region50: #{nerf_pallas.1} parent=1 // pred_check
      _
    $region51: #{nerf_pallas.1} parent=1 // pred_check_branch
      %134 = sbr.rel (0) target = $region53
    $region52: #{nerf_pallas.1} parent=1 // pred_region
      _
    $region53: #{nerf_pallas.1} parent=1 // pred_fallthru
      _
    // Predicated region
    $region54: #{nerf_pallas.1} parent=1 // pred_check
      _
    $region55: #{nerf_pallas.1} parent=1 // pred_check_branch
      %136 = sbr.rel (0) target = $region57
    $region56: #{nerf_pallas.1} parent=1 // pred_region
      _
    $region57: #{nerf_pallas.1} parent=1 // pred_fallthru
      _
    // Predicated region
    $region58: #{nerf_pallas.1} parent=1 // pred_check
      _
    $region59: #{nerf_pallas.1} parent=1 // pred_check_branch
      %138 = sbr.rel (0) target = $region61
    $region60: #{nerf_pallas.1} parent=1 // pred_region
      _
    $region61: #{nerf_pallas.1} parent=1 // pred_fallthru
      _
    // Predicated region
    $region62: #{nerf_pallas.1} parent=1 // pred_check
      _
    $region63: #{nerf_pallas.1} parent=1 // pred_check_branch
      %140 = sbr.rel (0) target = $region65
    $region64: #{nerf_pallas.1} parent=1 // pred_region
      _
    $region65: #{nerf_pallas.1} parent=1 // pred_fallthru
      _
    // Predicated region
    $region66: #{nerf_pallas.1} parent=1 // pred_check
      _
    $region67: #{nerf_pallas.1} parent=1 // pred_check_branch
      %142 = sbr.rel (0) target = $region69
    $region68: #{nerf_pallas.1} parent=1 // pred_region
      _
    $region69: #{nerf_pallas.1} parent=1 // pred_fallthru
      _
    // Predicated region
    $region70: #{nerf_pallas.1} parent=1 // pred_check
      _
    $region71: #{nerf_pallas.1} parent=1 // pred_check_branch
      %144 = sbr.rel (0) target = $region73
    $region72: #{nerf_pallas.1} parent=1 // pred_region
      %s146 = ssub.s32 2048, 2048
      %147 = vsyncadd [#allocation14], %s146
      %s148 = sshll.u32 [#allocation15], 4
      %s149 = int_to_ptr.vmem [resolvable:$true] %s148
      %154 = dma.hbm_to_vmem [thread:$0]  %s17, 2048, %s149, [#allocation14], 64, 64, 4
    $region73: #{nerf_pallas.1} parent=1 // pred_fallthru
      _
    // Predicated region
    $region74: #{nerf_pallas.1} parent=1 // pred_check
      _
    $region75: #{nerf_pallas.1} parent=1 // pred_check_branch
      %156 = sbr.rel (0) target = $region77
    $region76: #{nerf_pallas.1} parent=1 // pred_region
      _
    $region77: #{nerf_pallas.1} parent=1 // pred_fallthru
      _
    // Predicated region
    $region78: #{nerf_pallas.1} parent=1 // pred_check
      _
    $region79: #{nerf_pallas.1} parent=1 // pred_check_branch
      %158 = sbr.rel (0) target = $region81
    $region80: #{nerf_pallas.1} parent=1 // pred_region
      %159 = dma.done [#allocation3], 4096
    $region81: #{nerf_pallas.1} parent=1 // pred_fallthru
      _
    // Predicated region
    $region82: #{nerf_pallas.1} parent=1 // pred_check
      _
    $region83: #{nerf_pallas.1} parent=1 // pred_check_branch
      %161 = sbr.rel (0) target = $region85
    $region84: #{nerf_pallas.1} parent=1 // pred_region
      %162 = dma.done [#allocation5], 4096
    $region85: #{nerf_pallas.1} parent=1 // pred_fallthru
      _
    // Predicated region
    $region86: #{nerf_pallas.1} parent=1 // pred_check
      _
    $region87: #{nerf_pallas.1} parent=1 // pred_check_branch
      %164 = sbr.rel (0) target = $region89
    $region88: #{nerf_pallas.1} parent=1 // pred_region
      %165 = dma.done [#allocation5], 4096
    $region89: #{nerf_pallas.1} parent=1 // pred_fallthru
      _
    // Predicated region
    $region90: #{nerf_pallas.1} parent=1 // pred_check
      _
    $region91: #{nerf_pallas.1} parent=1 // pred_check_branch
      %167 = sbr.rel (0) target = $region93
    $region92: #{nerf_pallas.1} parent=1 // pred_region
      %168 = dma.done [#allocation8], 4096
    $region93: #{nerf_pallas.1} parent=1 // pred_fallthru
      _
    // Predicated region
    $region94: #{nerf_pallas.1} parent=1 // pred_check
      _
    $region95: #{nerf_pallas.1} parent=1 // pred_check_branch
      %170 = sbr.rel (0) target = $region97
    $region96: #{nerf_pallas.1} parent=1 // pred_region
      %171 = dma.done [#allocation8], 4096
    $region97: #{nerf_pallas.1} parent=1 // pred_fallthru
      _
    // Predicated region
    $region98: #{nerf_pallas.1} parent=1 // pred_check
      _
    $region99: #{nerf_pallas.1} parent=1 // pred_check_branch
      %173 = sbr.rel (0) target = $region101
    $region100: #{nerf_pallas.1} parent=1 // pred_region
      %174 = dma.done [#allocation11], 4096
    $region101: #{nerf_pallas.1} parent=1 // pred_fallthru
      _
    // Predicated region
    $region102: #{nerf_pallas.1} parent=1 // pred_check
      _
    $region103: #{nerf_pallas.1} parent=1 // pred_check_branch
      %176 = sbr.rel (0) target = $region105
    $region104: #{nerf_pallas.1} parent=1 // pred_region
      %177 = dma.done [#allocation11], 4096
    $region105: #{nerf_pallas.1} parent=1 // pred_fallthru
      _
    // Predicated region
    $region106: #{nerf_pallas.1} parent=1 // pred_check
      _
    $region107: #{nerf_pallas.1} parent=1 // pred_check_branch
      %179 = sbr.rel (0) target = $region109
    $region108: #{nerf_pallas.1} parent=1 // pred_region
      %180 = dma.done [#allocation14], 4096
    $region109: #{nerf_pallas.1} parent=1 // pred_fallthru
      _
    // Predicated region
    $region110: #{nerf_pallas.1} parent=1 // pred_check
      _
    $region111: #{nerf_pallas.1} parent=1 // pred_check_branch
      %182 = sbr.rel (0) target = $region113
    $region112: #{nerf_pallas.1} parent=1 // pred_region
      %183 = dma.done [#allocation14], 2048
    $region113: #{nerf_pallas.1} parent=1 // pred_fallthru
      _
    %v185 = vld [vmem:[%s0] sm:$0xf]
    %v186 = vld [vmem:[%s0 + $0x4] sm:$0xf]
    %v187 = vld [vmem:[#allocation2] sm:$0xff]
    %v188 = vld [vmem:[#allocation2 + $0x8] sm:$0xff]
    %v189 = vld [vmem:[#allocation2 + $0x10] sm:$0xff]
    %v190 = vld [vmem:[#allocation2 + $0x18] sm:$0xff]
    %v191 = vld [vmem:[#allocation2 + $0x20] sm:$0xff]
    %v192 = vld [vmem:[#allocation2 + $0x28] sm:$0xff]
    %v193 = vld [vmem:[#allocation2 + $0x30] sm:$0xff]
    %v194 = vld [vmem:[#allocation2 + $0x38] sm:$0xff]
    %v195 = vld [vmem:[#allocation2 + $0x40] sm:$0xff]
    %v196 = vld [vmem:[#allocation2 + $0x48] sm:$0xff]
    %v197 = vld [vmem:[#allocation2 + $0x50] sm:$0xff]
    %v198 = vld [vmem:[#allocation2 + $0x58] sm:$0xff]
    %v199 = vld [vmem:[#allocation2 + $0x60] sm:$0xff]
    %v200 = vld [vmem:[#allocation2 + $0x68] sm:$0xff]
    %v201 = vld [vmem:[#allocation2 + $0x70] sm:$0xff]
    %v202 = vld [vmem:[#allocation2 + $0x78] sm:$0xff]
    %v203 = vld [vmem:[#allocation2 + $0x80] sm:$0xff]
    %v204 = vld [vmem:[#allocation2 + $0x88] sm:$0xff]
    %v205 = vld [vmem:[#allocation2 + $0x90] sm:$0xff]
    %v206 = vld [vmem:[#allocation2 + $0x98] sm:$0xff]
    %v207 = vld [vmem:[#allocation2 + $0xa0] sm:$0xff]
    %v208 = vld [vmem:[#allocation2 + $0xa8] sm:$0xff]
    %v209 = vld [vmem:[#allocation2 + $0xb0] sm:$0xff]
    %v210 = vld [vmem:[#allocation2 + $0xb8] sm:$0xff]
    %v211 = vld [vmem:[#allocation2 + $0xc0] sm:$0xff]
    %v212 = vld [vmem:[#allocation2 + $0xc8] sm:$0xff]
    %v213 = vld [vmem:[#allocation2 + $0xd0] sm:$0xff]
    %v214 = vld [vmem:[#allocation2 + $0xd8] sm:$0xff]
    %v215 = vld [vmem:[#allocation2 + $0xe0] sm:$0xff]
    %v216 = vld [vmem:[#allocation2 + $0xe8] sm:$0xff]
    %v217 = vld [vmem:[#allocation2 + $0xf0] sm:$0xff]
    %v218 = vld [vmem:[#allocation2 + $0xf8] sm:$0xff]
    %v221 = vunpack.c.l.b16 %v185
    %v222 = vunpack.c.l.b16 %v186
    %v223 = vpack.c.b16 %v222, %v221
    %v257 = vunpack.c.l.b16 %v187
    %v258 = vunpack.c.h.b16 %v187
    %v259 = vunpack.c.l.b16 %v188
    %v260 = vunpack.c.h.b16 %v188
    %v261 = vunpack.c.l.b16 %v189
    %v262 = vunpack.c.h.b16 %v189
    %v263 = vunpack.c.l.b16 %v190
    %v264 = vunpack.c.h.b16 %v190
    %v265 = vunpack.c.l.b16 %v191
    %v266 = vunpack.c.h.b16 %v191
    %v267 = vunpack.c.l.b16 %v192
    %v268 = vunpack.c.h.b16 %v192
    %v269 = vunpack.c.l.b16 %v193
    %v270 = vunpack.c.h.b16 %v193
    %v271 = vunpack.c.l.b16 %v194
    %v272 = vunpack.c.h.b16 %v194
    %v273 = vunpack.c.l.b16 %v195
    %v274 = vunpack.c.h.b16 %v195
    %v275 = vunpack.c.l.b16 %v196
    %v276 = vunpack.c.h.b16 %v196
    %v277 = vunpack.c.l.b16 %v197
    %v278 = vunpack.c.h.b16 %v197
    %v279 = vunpack.c.l.b16 %v198
    %v280 = vunpack.c.h.b16 %v198
    %v281 = vunpack.c.l.b16 %v199
    %v282 = vunpack.c.h.b16 %v199
    %v283 = vunpack.c.l.b16 %v200
    %v284 = vunpack.c.h.b16 %v200
    %v285 = vunpack.c.l.b16 %v201
    %v286 = vunpack.c.h.b16 %v201
    %v287 = vunpack.c.l.b16 %v202
    %v288 = vunpack.c.h.b16 %v202
    %v289 = vunpack.c.l.b16 %v203
    %v290 = vunpack.c.h.b16 %v203
    %v291 = vunpack.c.l.b16 %v204
    %v292 = vunpack.c.h.b16 %v204
    %v293 = vunpack.c.l.b16 %v205
    %v294 = vunpack.c.h.b16 %v205
    %v295 = vunpack.c.l.b16 %v206
    %v296 = vunpack.c.h.b16 %v206
    %v297 = vunpack.c.l.b16 %v207
    %v298 = vunpack.c.h.b16 %v207
    %v299 = vunpack.c.l.b16 %v208
    %v300 = vunpack.c.h.b16 %v208
    %v301 = vunpack.c.l.b16 %v209
    %v302 = vunpack.c.h.b16 %v209
    %v303 = vunpack.c.l.b16 %v210
    %v304 = vunpack.c.h.b16 %v210
    %v305 = vunpack.c.l.b16 %v211
    %v306 = vunpack.c.h.b16 %v211
    %v307 = vunpack.c.l.b16 %v212
    %v308 = vunpack.c.h.b16 %v212
    %v309 = vunpack.c.l.b16 %v213
    %v310 = vunpack.c.h.b16 %v213
    %v311 = vunpack.c.l.b16 %v214
    %v312 = vunpack.c.h.b16 %v214
    %v313 = vunpack.c.l.b16 %v215
    %v314 = vunpack.c.h.b16 %v215
    %v315 = vunpack.c.l.b16 %v216
    %v316 = vunpack.c.h.b16 %v216
    %v317 = vunpack.c.l.b16 %v217
    %v318 = vunpack.c.h.b16 %v217
    %v319 = vunpack.c.l.b16 %v218
    %v320 = vunpack.c.h.b16 %v218
    %v321 = vpack.c.b16 %v261, %v257
    %v322 = vpack.c.b16 %v262, %v258
    %v323 = vpack.c.b16 %v263, %v259
    %v324 = vpack.c.b16 %v264, %v260
    %v325 = vpack.c.b16 %v269, %v265
    %v326 = vpack.c.b16 %v270, %v266
    %v327 = vpack.c.b16 %v271, %v267
    %v328 = vpack.c.b16 %v272, %v268
    %v329 = vpack.c.b16 %v277, %v273
    %v330 = vpack.c.b16 %v278, %v274
    %v331 = vpack.c.b16 %v279, %v275
    %v332 = vpack.c.b16 %v280, %v276
    %v333 = vpack.c.b16 %v285, %v281
    %v334 = vpack.c.b16 %v286, %v282
    %v335 = vpack.c.b16 %v287, %v283
    %v336 = vpack.c.b16 %v288, %v284
    %v337 = vpack.c.b16 %v293, %v289
    %v338 = vpack.c.b16 %v294, %v290
    %v339 = vpack.c.b16 %v295, %v291
    %v340 = vpack.c.b16 %v296, %v292
    %v341 = vpack.c.b16 %v301, %v297
    %v342 = vpack.c.b16 %v302, %v298
    %v343 = vpack.c.b16 %v303, %v299
    %v344 = vpack.c.b16 %v304, %v300
    %v345 = vpack.c.b16 %v309, %v305
    %v346 = vpack.c.b16 %v310, %v306
    %v347 = vpack.c.b16 %v311, %v307
    %v348 = vpack.c.b16 %v312, %v308
    %v349 = vpack.c.b16 %v317, %v313
    %v350 = vpack.c.b16 %v318, %v314
    %v351 = vpack.c.b16 %v319, %v315
    %v352 = vpack.c.b16 %v320, %v316
    %385 = vmatprep.subr.bf16.mxu0 %v322
    %386 = vmatpush1.bf16.msra.mxu0 %v321
    %387 = vmatprep.subr.bf16.mxu0 %v326
    %388 = vmatpush1.bf16.msra.mxu0 %v325
    %389 = vmatprep.subr.bf16.mxu0 %v330
    %390 = vmatpush1.bf16.msra.mxu0 %v329
    %391 = vmatprep.subr.bf16.mxu0 %v334
    %392 = vmatpush1.bf16.msra.mxu0 %v333
    %393 = vmatprep.subr.bf16.mxu0 %v338
    %394 = vmatpush1.bf16.msra.mxu0 %v337
    %395 = vmatprep.subr.bf16.mxu0 %v342
    %396 = vmatpush1.bf16.msra.mxu0 %v341
    %397 = vmatprep.subr.bf16.mxu0 %v346
    %398 = vmatpush1.bf16.msra.mxu0 %v345
    %399 = vmatprep.subr.bf16.mxu0 %v350
    %400 = vmatpush1.bf16.msra.mxu0 %v349
    %401 = vmatprep.subr.bf16.mxu0 0
    %402 = vmatpush1.bf16.msra.mxu0 0
    %403 = vmatprep.subr.bf16.mxu0 0
    %404 = vmatpush1.bf16.msra.mxu0 0
    %405 = vmatprep.subr.bf16.mxu0 0
    %406 = vmatpush1.bf16.msra.mxu0 0
    %407 = vmatprep.subr.bf16.mxu0 0
    %408 = vmatpush1.bf16.msra.mxu0 0
    %409 = vmatprep.subr.bf16.mxu0 0
    %410 = vmatpush1.bf16.msra.mxu0 0
    %411 = vmatprep.subr.bf16.mxu0 0
    %412 = vmatpush1.bf16.msra.mxu0 0
    %413 = vmatprep.subr.bf16.mxu0 0
    %414 = vmatpush1.bf16.msra.mxu0 0
    %415 = vmatprep.subr.bf16.mxu0 0
    %416 = vmatpush1.bf16.msra.mxu0 0
    %417 = vmatprep.mubr.bf16.mxu0 0
    %418 = vmatmul.mubr.bf16.gmra.mrb[0].mxu0 %v223
    %v419 = vpop.f32.mrb[0].mxu0
    %v420 = vadd.f32 0.0, %v419
    %v421 = vpop.f32.mrb[0].mxu0
    %v422 = vadd.f32 0.0, %v421
    %v423 = vpop.f32.mrb[0].mxu0
    %v424 = vadd.f32 0.0, %v423
    %v425 = vpop.f32.mrb[0].mxu0
    %v426 = vadd.f32 0.0, %v425
    %427 = vdwg.mxu0
    %428 = vmatprep.subr.bf16.mxu0 %v324
    %429 = vmatpush1.bf16.msra.mxu0 %v323
    %430 = vmatprep.subr.bf16.mxu0 %v328
    %431 = vmatpush1.bf16.msra.mxu0 %v327
    %432 = vmatprep.subr.bf16.mxu0 %v332
    %433 = vmatpush1.bf16.msra.mxu0 %v331
    %434 = vmatprep.subr.bf16.mxu0 %v336
    %435 = vmatpush1.bf16.msra.mxu0 %v335
    %436 = vmatprep.subr.bf16.mxu0 %v340
    %437 = vmatpush1.bf16.msra.mxu0 %v339
    %438 = vmatprep.subr.bf16.mxu0 %v344
    %439 = vmatpush1.bf16.msra.mxu0 %v343
    %440 = vmatprep.subr.bf16.mxu0 %v348
    %441 = vmatpush1.bf16.msra.mxu0 %v347
    %442 = vmatprep.subr.bf16.mxu0 %v352
    %443 = vmatpush1.bf16.msra.mxu0 %v351
    %444 = vmatprep.subr.bf16.mxu0 0
    %445 = vmatpush1.bf16.msra.mxu0 0
    %446 = vmatprep.subr.bf16.mxu0 0
    %447 = vmatpush1.bf16.msra.mxu0 0
    %448 = vmatprep.subr.bf16.mxu0 0
    %449 = vmatpush1.bf16.msra.mxu0 0
    %450 = vmatprep.subr.bf16.mxu0 0
    %451 = vmatpush1.bf16.msra.mxu0 0
    %452 = vmatprep.subr.bf16.mxu0 0
    %453 = vmatpush1.bf16.msra.mxu0 0
    %454 = vmatprep.subr.bf16.mxu0 0
    %455 = vmatpush1.bf16.msra.mxu0 0
    %456 = vmatprep.subr.bf16.mxu0 0
    %457 = vmatpush1.bf16.msra.mxu0 0
    %458 = vmatprep.subr.bf16.mxu0 0
    %459 = vmatpush1.bf16.msra.mxu0 0
    %460 = vmatprep.mubr.bf16.mxu0 0
    %461 = vmatmul.mubr.bf16.gmra.mrb[0].mxu0 %v223
    %v462 = vpop.f32.mrb[0].mxu0
    %v463 = vadd.f32 0.0, %v462
    %v464 = vpop.f32.mrb[0].mxu0
    %v465 = vadd.f32 0.0, %v464
    %v466 = vpop.f32.mrb[0].mxu0
    %v467 = vadd.f32 0.0, %v466
    %v468 = vpop.f32.mrb[0].mxu0
    %v469 = vadd.f32 0.0, %v468
    %470 = vdwg.mxu0
    %v471 = vld [vmem:[%s9] sm:$0x3]
    %v473 = vlaneseq
    %v474 = vshrl.u32 %v473, 7
    %v475 = vsub.s32 0, %v474
    %v476 = vrot.slane %v471, %v475
    %v477 = vlaneseq
    %v478 = vshrl.u32 %v477, 7
    %v479 = vsub.s32 1, %v478
    %v480 = vrot.slane %v471, %v479
    %v483 = vadd.f32 %v420, %v476
    %v484 = vadd.f32 %v422, %v480
    %v485 = vadd.f32 %v424, %v476
    %v486 = vadd.f32 %v426, %v480
    %v487 = vmax.f32 %v483, 0.0
    %v488 = vmax.f32 %v484, 0.0
    %v489 = vmax.f32 %v485, 0.0
    %v490 = vmax.f32 %v486, 0.0
    %v491 = vpack.c.bf16 %v489, %v487
    %v492 = vpack.c.bf16 %v490, %v488
    %v493 = vld [vmem:[#allocation4] sm:$0xff]
    %v494 = vld [vmem:[#allocation4 + $0x8] sm:$0xff]
    %v495 = vld [vmem:[#allocation4 + $0x10] sm:$0xff]
    %v496 = vld [vmem:[#allocation4 + $0x18] sm:$0xff]
    %v497 = vld [vmem:[#allocation4 + $0x20] sm:$0xff]
    %v498 = vld [vmem:[#allocation4 + $0x28] sm:$0xff]
    %v499 = vld [vmem:[#allocation4 + $0x30] sm:$0xff]
    %v500 = vld [vmem:[#allocation4 + $0x38] sm:$0xff]
    %v501 = vld [vmem:[#allocation4 + $0x40] sm:$0xff]
    %v502 = vld [vmem:[#allocation4 + $0x48] sm:$0xff]
    %v503 = vld [vmem:[#allocation4 + $0x50] sm:$0xff]
    %v504 = vld [vmem:[#allocation4 + $0x58] sm:$0xff]
    %v505 = vld [vmem:[#allocation4 + $0x60] sm:$0xff]
    %v506 = vld [vmem:[#allocation4 + $0x68] sm:$0xff]
    %v507 = vld [vmem:[#allocation4 + $0x70] sm:$0xff]
    %v508 = vld [vmem:[#allocation4 + $0x78] sm:$0xff]
    %v509 = vld [vmem:[#allocation4 + $0x80] sm:$0xff]
    %v510 = vld [vmem:[#allocation4 + $0x88] sm:$0xff]
    %v511 = vld [vmem:[#allocation4 + $0x90] sm:$0xff]
    %v512 = vld [vmem:[#allocation4 + $0x98] sm:$0xff]
    %v513 = vld [vmem:[#allocation4 + $0xa0] sm:$0xff]
    %v514 = vld [vmem:[#allocation4 + $0xa8] sm:$0xff]
    %v515 = vld [vmem:[#allocation4 + $0xb0] sm:$0xff]
    %v516 = vld [vmem:[#allocation4 + $0xb8] sm:$0xff]
    %v517 = vld [vmem:[#allocation4 + $0xc0] sm:$0xff]
    %v518 = vld [vmem:[#allocation4 + $0xc8] sm:$0xff]
    %v519 = vld [vmem:[#allocation4 + $0xd0] sm:$0xff]
    %v520 = vld [vmem:[#allocation4 + $0xd8] sm:$0xff]
    %v521 = vld [vmem:[#allocation4 + $0xe0] sm:$0xff]
    %v522 = vld [vmem:[#allocation4 + $0xe8] sm:$0xff]
    %v523 = vld [vmem:[#allocation4 + $0xf0] sm:$0xff]
    %v524 = vld [vmem:[#allocation4 + $0xf8] sm:$0xff]
    %v525 = vld [vmem:[%s10] sm:$0x3]
    %v527 = vlaneseq
    %v528 = vshrl.u32 %v527, 7
    %v529 = vsub.s32 0, %v528
    %v530 = vrot.slane %v525, %v529
    %v531 = vlaneseq
    %v532 = vshrl.u32 %v531, 7
    %v533 = vsub.s32 1, %v532
    %v534 = vrot.slane %v525, %v533
    %v569 = vunpack.c.l.b16 %v493
    %v570 = vunpack.c.h.b16 %v493
    %v571 = vunpack.c.l.b16 %v494
    %v572 = vunpack.c.h.b16 %v494
    %v573 = vunpack.c.l.b16 %v495
    %v574 = vunpack.c.h.b16 %v495
    %v575 = vunpack.c.l.b16 %v496
    %v576 = vunpack.c.h.b16 %v496
    %v577 = vunpack.c.l.b16 %v497
    %v578 = vunpack.c.h.b16 %v497
    %v579 = vunpack.c.l.b16 %v498
    %v580 = vunpack.c.h.b16 %v498
    %v581 = vunpack.c.l.b16 %v499
    %v582 = vunpack.c.h.b16 %v499
    %v583 = vunpack.c.l.b16 %v500
    %v584 = vunpack.c.h.b16 %v500
    %v585 = vunpack.c.l.b16 %v501
    %v586 = vunpack.c.h.b16 %v501
    %v587 = vunpack.c.l.b16 %v502
    %v588 = vunpack.c.h.b16 %v502
    %v589 = vunpack.c.l.b16 %v503
    %v590 = vunpack.c.h.b16 %v503
    %v591 = vunpack.c.l.b16 %v504
    %v592 = vunpack.c.h.b16 %v504
    %v593 = vunpack.c.l.b16 %v505
    %v594 = vunpack.c.h.b16 %v505
    %v595 = vunpack.c.l.b16 %v506
    %v596 = vunpack.c.h.b16 %v506
    %v597 = vunpack.c.l.b16 %v507
    %v598 = vunpack.c.h.b16 %v507
    %v599 = vunpack.c.l.b16 %v508
    %v600 = vunpack.c.h.b16 %v508
    %v601 = vunpack.c.l.b16 %v509
    %v602 = vunpack.c.h.b16 %v509
    %v603 = vunpack.c.l.b16 %v510
    %v604 = vunpack.c.h.b16 %v510
    %v605 = vunpack.c.l.b16 %v511
    %v606 = vunpack.c.h.b16 %v511
    %v607 = vunpack.c.l.b16 %v512
    %v608 = vunpack.c.h.b16 %v512
    %v609 = vunpack.c.l.b16 %v513
    %v610 = vunpack.c.h.b16 %v513
    %v611 = vunpack.c.l.b16 %v514
    %v612 = vunpack.c.h.b16 %v514
    %v613 = vunpack.c.l.b16 %v515
    %v614 = vunpack.c.h.b16 %v515
    %v615 = vunpack.c.l.b16 %v516
    %v616 = vunpack.c.h.b16 %v516
    %v617 = vunpack.c.l.b16 %v517
    %v618 = vunpack.c.h.b16 %v517
    %v619 = vunpack.c.l.b16 %v518
    %v620 = vunpack.c.h.b16 %v518
    %v621 = vunpack.c.l.b16 %v519
    %v622 = vunpack.c.h.b16 %v519
    %v623 = vunpack.c.l.b16 %v520
    %v624 = vunpack.c.h.b16 %v520
    %v625 = vunpack.c.l.b16 %v521
    %v626 = vunpack.c.h.b16 %v521
    %v627 = vunpack.c.l.b16 %v522
    %v628 = vunpack.c.h.b16 %v522
    %v629 = vunpack.c.l.b16 %v523
    %v630 = vunpack.c.h.b16 %v523
    %v631 = vunpack.c.l.b16 %v524
    %v632 = vunpack.c.h.b16 %v524
    %v633 = vpack.c.b16 %v571, %v569
    %v634 = vpack.c.b16 %v572, %v570
    %v635 = vpack.c.b16 %v575, %v573
    %v636 = vpack.c.b16 %v576, %v574
    %v637 = vpack.c.b16 %v579, %v577
    %v638 = vpack.c.b16 %v580, %v578
    %v639 = vpack.c.b16 %v583, %v581
    %v640 = vpack.c.b16 %v584, %v582
    %v641 = vpack.c.b16 %v587, %v585
    %v642 = vpack.c.b16 %v588, %v586
    %v643 = vpack.c.b16 %v591, %v589
    %v644 = vpack.c.b16 %v592, %v590
    %v645 = vpack.c.b16 %v595, %v593
    %v646 = vpack.c.b16 %v596, %v594
    %v647 = vpack.c.b16 %v599, %v597
    %v648 = vpack.c.b16 %v600, %v598
    %v649 = vpack.c.b16 %v603, %v601
    %v650 = vpack.c.b16 %v604, %v602
    %v651 = vpack.c.b16 %v607, %v605
    %v652 = vpack.c.b16 %v608, %v606
    %v653 = vpack.c.b16 %v611, %v609
    %v654 = vpack.c.b16 %v612, %v610
    %v655 = vpack.c.b16 %v615, %v613
    %v656 = vpack.c.b16 %v616, %v614
    %v657 = vpack.c.b16 %v619, %v617
    %v658 = vpack.c.b16 %v620, %v618
    %v659 = vpack.c.b16 %v623, %v621
    %v660 = vpack.c.b16 %v624, %v622
    %v661 = vpack.c.b16 %v627, %v625
    %v662 = vpack.c.b16 %v628, %v626
    %v663 = vpack.c.b16 %v631, %v629
    %v664 = vpack.c.b16 %v632, %v630
    %697 = vmatprep.subr.bf16.mxu0 %v634
    %698 = vmatpush1.bf16.msra.mxu0 %v633
    %699 = vmatprep.subr.bf16.mxu0 %v636
    %700 = vmatpush1.bf16.msra.mxu0 %v635
    %701 = vmatprep.subr.bf16.mxu0 %v638
    %702 = vmatpush1.bf16.msra.mxu0 %v637
    %703 = vmatprep.subr.bf16.mxu0 %v640
    %704 = vmatpush1.bf16.msra.mxu0 %v639
    %705 = vmatprep.subr.bf16.mxu0 %v642
    %706 = vmatpush1.bf16.msra.mxu0 %v641
    %707 = vmatprep.subr.bf16.mxu0 %v644
    %708 = vmatpush1.bf16.msra.mxu0 %v643
    %709 = vmatprep.subr.bf16.mxu0 %v646
    %710 = vmatpush1.bf16.msra.mxu0 %v645
    %711 = vmatprep.subr.bf16.mxu0 %v648
    %712 = vmatpush1.bf16.msra.mxu0 %v647
    %713 = vmatprep.subr.bf16.mxu0 %v650
    %714 = vmatpush1.bf16.msra.mxu0 %v649
    %715 = vmatprep.subr.bf16.mxu0 %v652
    %716 = vmatpush1.bf16.msra.mxu0 %v651
    %717 = vmatprep.subr.bf16.mxu0 %v654
    %718 = vmatpush1.bf16.msra.mxu0 %v653
    %719 = vmatprep.subr.bf16.mxu0 %v656
    %720 = vmatpush1.bf16.msra.mxu0 %v655
    %721 = vmatprep.subr.bf16.mxu0 %v658
    %722 = vmatpush1.bf16.msra.mxu0 %v657
    %723 = vmatprep.subr.bf16.mxu0 %v660
    %724 = vmatpush1.bf16.msra.mxu0 %v659
    %725 = vmatprep.subr.bf16.mxu0 %v662
    %726 = vmatpush1.bf16.msra.mxu0 %v661
    %727 = vmatprep.subr.bf16.mxu0 %v664
    %728 = vmatpush1.bf16.msra.mxu0 %v663
    %729 = vmatprep.mubr.bf16.mxu0 %v492
    %730 = vmatmul.mubr.bf16.gmra.mrb[0].mxu0 %v491
    %v731 = vpop.f32.mrb[0].mxu0
    %v732 = vadd.f32 %v530, %v731
    %v733 = vpop.f32.mrb[0].mxu0
    %v734 = vadd.f32 %v534, %v733
    %v735 = vpop.f32.mrb[0].mxu0
    %v736 = vadd.f32 %v530, %v735
    %v737 = vpop.f32.mrb[0].mxu0
    %v738 = vadd.f32 %v534, %v737
    %739 = vdwg.mxu0
    %v740 = vmax.f32 %v732, 0.0
    %v741 = vmax.f32 %v734, 0.0
    %v742 = vmax.f32 %v736, 0.0
    %v743 = vmax.f32 %v738, 0.0
    %v744 = vpack.c.bf16 %v742, %v740
    %v745 = vpack.c.bf16 %v743, %v741
    %v746 = vld [vmem:[#allocation6] sm:$0xff]
    %v747 = vld [vmem:[#allocation6 + $0x8] sm:$0xff]
    %v748 = vld [vmem:[#allocation6 + $0x10] sm:$0xff]
    %v749 = vld [vmem:[#allocation6 + $0x18] sm:$0xff]
    %v750 = vld [vmem:[#allocation6 + $0x20] sm:$0xff]
    %v751 = vld [vmem:[#allocation6 + $0x28] sm:$0xff]
    %v752 = vld [vmem:[#allocation6 + $0x30] sm:$0xff]
    %v753 = vld [vmem:[#allocation6 + $0x38] sm:$0xff]
    %v754 = vld [vmem:[#allocation6 + $0x40] sm:$0xff]
    %v755 = vld [vmem:[#allocation6 + $0x48] sm:$0xff]
    %v756 = vld [vmem:[#allocation6 + $0x50] sm:$0xff]
    %v757 = vld [vmem:[#allocation6 + $0x58] sm:$0xff]
    %v758 = vld [vmem:[#allocation6 + $0x60] sm:$0xff]
    %v759 = vld [vmem:[#allocation6 + $0x68] sm:$0xff]
    %v760 = vld [vmem:[#allocation6 + $0x70] sm:$0xff]
    %v761 = vld [vmem:[#allocation6 + $0x78] sm:$0xff]
    %v762 = vld [vmem:[#allocation6 + $0x80] sm:$0xff]
    %v763 = vld [vmem:[#allocation6 + $0x88] sm:$0xff]
    %v764 = vld [vmem:[#allocation6 + $0x90] sm:$0xff]
    %v765 = vld [vmem:[#allocation6 + $0x98] sm:$0xff]
    %v766 = vld [vmem:[#allocation6 + $0xa0] sm:$0xff]
    %v767 = vld [vmem:[#allocation6 + $0xa8] sm:$0xff]
    %v768 = vld [vmem:[#allocation6 + $0xb0] sm:$0xff]
    %v769 = vld [vmem:[#allocation6 + $0xb8] sm:$0xff]
    %v770 = vld [vmem:[#allocation6 + $0xc0] sm:$0xff]
    %v771 = vld [vmem:[#allocation6 + $0xc8] sm:$0xff]
    %v772 = vld [vmem:[#allocation6 + $0xd0] sm:$0xff]
    %v773 = vld [vmem:[#allocation6 + $0xd8] sm:$0xff]
    %v774 = vld [vmem:[#allocation6 + $0xe0] sm:$0xff]
    %v775 = vld [vmem:[#allocation6 + $0xe8] sm:$0xff]
    %v776 = vld [vmem:[#allocation6 + $0xf0] sm:$0xff]
    %v777 = vld [vmem:[#allocation6 + $0xf8] sm:$0xff]
    %v778 = vld [vmem:[%s11] sm:$0x3]
    %v780 = vlaneseq
    %v781 = vshrl.u32 %v780, 7
    %v782 = vsub.s32 0, %v781
    %v783 = vrot.slane %v778, %v782
    %v784 = vlaneseq
    %v785 = vshrl.u32 %v784, 7
    %v786 = vsub.s32 1, %v785
    %v787 = vrot.slane %v778, %v786
    %v822 = vunpack.c.l.b16 %v746
    %v823 = vunpack.c.h.b16 %v746
    %v824 = vunpack.c.l.b16 %v747
    %v825 = vunpack.c.h.b16 %v747
    %v826 = vunpack.c.l.b16 %v748
    %v827 = vunpack.c.h.b16 %v748
    %v828 = vunpack.c.l.b16 %v749
    %v829 = vunpack.c.h.b16 %v749
    %v830 = vunpack.c.l.b16 %v750
    %v831 = vunpack.c.h.b16 %v750
    %v832 = vunpack.c.l.b16 %v751
    %v833 = vunpack.c.h.b16 %v751
    %v834 = vunpack.c.l.b16 %v752
    %v835 = vunpack.c.h.b16 %v752
    %v836 = vunpack.c.l.b16 %v753
    %v837 = vunpack.c.h.b16 %v753
    %v838 = vunpack.c.l.b16 %v754
    %v839 = vunpack.c.h.b16 %v754
    %v840 = vunpack.c.l.b16 %v755
    %v841 = vunpack.c.h.b16 %v755
    %v842 = vunpack.c.l.b16 %v756
    %v843 = vunpack.c.h.b16 %v756
    %v844 = vunpack.c.l.b16 %v757
    %v845 = vunpack.c.h.b16 %v757
    %v846 = vunpack.c.l.b16 %v758
    %v847 = vunpack.c.h.b16 %v758
    %v848 = vunpack.c.l.b16 %v759
    %v849 = vunpack.c.h.b16 %v759
    %v850 = vunpack.c.l.b16 %v760
    %v851 = vunpack.c.h.b16 %v760
    %v852 = vunpack.c.l.b16 %v761
    %v853 = vunpack.c.h.b16 %v761
    %v854 = vunpack.c.l.b16 %v762
    %v855 = vunpack.c.h.b16 %v762
    %v856 = vunpack.c.l.b16 %v763
    %v857 = vunpack.c.h.b16 %v763
    %v858 = vunpack.c.l.b16 %v764
    %v859 = vunpack.c.h.b16 %v764
    %v860 = vunpack.c.l.b16 %v765
    %v861 = vunpack.c.h.b16 %v765
    %v862 = vunpack.c.l.b16 %v766
    %v863 = vunpack.c.h.b16 %v766
    %v864 = vunpack.c.l.b16 %v767
    %v865 = vunpack.c.h.b16 %v767
    %v866 = vunpack.c.l.b16 %v768
    %v867 = vunpack.c.h.b16 %v768
    %v868 = vunpack.c.l.b16 %v769
    %v869 = vunpack.c.h.b16 %v769
    %v870 = vunpack.c.l.b16 %v770
    %v871 = vunpack.c.h.b16 %v770
    %v872 = vunpack.c.l.b16 %v771
    %v873 = vunpack.c.h.b16 %v771
    %v874 = vunpack.c.l.b16 %v772
    %v875 = vunpack.c.h.b16 %v772
    %v876 = vunpack.c.l.b16 %v773
    %v877 = vunpack.c.h.b16 %v773
    %v878 = vunpack.c.l.b16 %v774
    %v879 = vunpack.c.h.b16 %v774
    %v880 = vunpack.c.l.b16 %v775
    %v881 = vunpack.c.h.b16 %v775
    %v882 = vunpack.c.l.b16 %v776
    %v883 = vunpack.c.h.b16 %v776
    %v884 = vunpack.c.l.b16 %v777
    %v885 = vunpack.c.h.b16 %v777
    %v886 = vpack.c.b16 %v824, %v822
    %v887 = vpack.c.b16 %v825, %v823
    %v888 = vpack.c.b16 %v828, %v826
    %v889 = vpack.c.b16 %v829, %v827
    %v890 = vpack.c.b16 %v832, %v830
    %v891 = vpack.c.b16 %v833, %v831
    %v892 = vpack.c.b16 %v836, %v834
    %v893 = vpack.c.b16 %v837, %v835
    %v894 = vpack.c.b16 %v840, %v838
    %v895 = vpack.c.b16 %v841, %v839
    %v896 = vpack.c.b16 %v844, %v842
    %v897 = vpack.c.b16 %v845, %v843
    %v898 = vpack.c.b16 %v848, %v846
    %v899 = vpack.c.b16 %v849, %v847
    %v900 = vpack.c.b16 %v852, %v850
    %v901 = vpack.c.b16 %v853, %v851
    %v902 = vpack.c.b16 %v856, %v854
    %v903 = vpack.c.b16 %v857, %v855
    %v904 = vpack.c.b16 %v860, %v858
    %v905 = vpack.c.b16 %v861, %v859
    %v906 = vpack.c.b16 %v864, %v862
    %v907 = vpack.c.b16 %v865, %v863
    %v908 = vpack.c.b16 %v868, %v866
    %v909 = vpack.c.b16 %v869, %v867
    %v910 = vpack.c.b16 %v872, %v870
    %v911 = vpack.c.b16 %v873, %v871
    %v912 = vpack.c.b16 %v876, %v874
    %v913 = vpack.c.b16 %v877, %v875
    %v914 = vpack.c.b16 %v880, %v878
    %v915 = vpack.c.b16 %v881, %v879
    %v916 = vpack.c.b16 %v884, %v882
    %v917 = vpack.c.b16 %v885, %v883
    %950 = vmatprep.subr.bf16.mxu0 %v887
    %951 = vmatpush1.bf16.msra.mxu0 %v886
    %952 = vmatprep.subr.bf16.mxu0 %v889
    %953 = vmatpush1.bf16.msra.mxu0 %v888
    %954 = vmatprep.subr.bf16.mxu0 %v891
    %955 = vmatpush1.bf16.msra.mxu0 %v890
    %956 = vmatprep.subr.bf16.mxu0 %v893
    %957 = vmatpush1.bf16.msra.mxu0 %v892
    %958 = vmatprep.subr.bf16.mxu0 %v895
    %959 = vmatpush1.bf16.msra.mxu0 %v894
    %960 = vmatprep.subr.bf16.mxu0 %v897
    %961 = vmatpush1.bf16.msra.mxu0 %v896
    %962 = vmatprep.subr.bf16.mxu0 %v899
    %963 = vmatpush1.bf16.msra.mxu0 %v898
    %964 = vmatprep.subr.bf16.mxu0 %v901
    %965 = vmatpush1.bf16.msra.mxu0 %v900
    %966 = vmatprep.subr.bf16.mxu0 %v903
    %967 = vmatpush1.bf16.msra.mxu0 %v902
    %968 = vmatprep.subr.bf16.mxu0 %v905
    %969 = vmatpush1.bf16.msra.mxu0 %v904
    %970 = vmatprep.subr.bf16.mxu0 %v907
    %971 = vmatpush1.bf16.msra.mxu0 %v906
    %972 = vmatprep.subr.bf16.mxu0 %v909
    %973 = vmatpush1.bf16.msra.mxu0 %v908
    %974 = vmatprep.subr.bf16.mxu0 %v911
    %975 = vmatpush1.bf16.msra.mxu0 %v910
    %976 = vmatprep.subr.bf16.mxu0 %v913
    %977 = vmatpush1.bf16.msra.mxu0 %v912
    %978 = vmatprep.subr.bf16.mxu0 %v915
    %979 = vmatpush1.bf16.msra.mxu0 %v914
    %980 = vmatprep.subr.bf16.mxu0 %v917
    %981 = vmatpush1.bf16.msra.mxu0 %v916
    %982 = vmatprep.mubr.bf16.mxu0 %v745
    %983 = vmatmul.mubr.bf16.gmra.mrb[0].mxu0 %v744
    %v984 = vpop.f32.mrb[0].mxu0
    %v985 = vadd.f32 %v783, %v984
    %v986 = vpop.f32.mrb[0].mxu0
    %v987 = vadd.f32 %v787, %v986
    %v988 = vpop.f32.mrb[0].mxu0
    %v989 = vadd.f32 %v783, %v988
    %v990 = vpop.f32.mrb[0].mxu0
    %v991 = vadd.f32 %v787, %v990
    %992 = vdwg.mxu0
    %v993 = vmax.f32 %v985, 0.0
    %v994 = vmax.f32 %v987, 0.0
    %v995 = vmax.f32 %v989, 0.0
    %v996 = vmax.f32 %v991, 0.0
    %v997 = vpack.c.bf16 %v995, %v993
    %v998 = vpack.c.bf16 %v996, %v994
    %v999 = vld [vmem:[#allocation7] sm:$0xff]
    %v1000 = vld [vmem:[#allocation7 + $0x8] sm:$0xff]
    %v1001 = vld [vmem:[#allocation7 + $0x10] sm:$0xff]
    %v1002 = vld [vmem:[#allocation7 + $0x18] sm:$0xff]
    %v1003 = vld [vmem:[#allocation7 + $0x20] sm:$0xff]
    %v1004 = vld [vmem:[#allocation7 + $0x28] sm:$0xff]
    %v1005 = vld [vmem:[#allocation7 + $0x30] sm:$0xff]
    %v1006 = vld [vmem:[#allocation7 + $0x38] sm:$0xff]
    %v1007 = vld [vmem:[#allocation7 + $0x40] sm:$0xff]
    %v1008 = vld [vmem:[#allocation7 + $0x48] sm:$0xff]
    %v1009 = vld [vmem:[#allocation7 + $0x50] sm:$0xff]
    %v1010 = vld [vmem:[#allocation7 + $0x58] sm:$0xff]
    %v1011 = vld [vmem:[#allocation7 + $0x60] sm:$0xff]
    %v1012 = vld [vmem:[#allocation7 + $0x68] sm:$0xff]
    %v1013 = vld [vmem:[#allocation7 + $0x70] sm:$0xff]
    %v1014 = vld [vmem:[#allocation7 + $0x78] sm:$0xff]
    %v1015 = vld [vmem:[#allocation7 + $0x80] sm:$0xff]
    %v1016 = vld [vmem:[#allocation7 + $0x88] sm:$0xff]
    %v1017 = vld [vmem:[#allocation7 + $0x90] sm:$0xff]
    %v1018 = vld [vmem:[#allocation7 + $0x98] sm:$0xff]
    %v1019 = vld [vmem:[#allocation7 + $0xa0] sm:$0xff]
    %v1020 = vld [vmem:[#allocation7 + $0xa8] sm:$0xff]
    %v1021 = vld [vmem:[#allocation7 + $0xb0] sm:$0xff]
    %v1022 = vld [vmem:[#allocation7 + $0xb8] sm:$0xff]
    %v1023 = vld [vmem:[#allocation7 + $0xc0] sm:$0xff]
    %v1024 = vld [vmem:[#allocation7 + $0xc8] sm:$0xff]
    %v1025 = vld [vmem:[#allocation7 + $0xd0] sm:$0xff]
    %v1026 = vld [vmem:[#allocation7 + $0xd8] sm:$0xff]
    %v1027 = vld [vmem:[#allocation7 + $0xe0] sm:$0xff]
    %v1028 = vld [vmem:[#allocation7 + $0xe8] sm:$0xff]
    %v1029 = vld [vmem:[#allocation7 + $0xf0] sm:$0xff]
    %v1030 = vld [vmem:[#allocation7 + $0xf8] sm:$0xff]
    %v1031 = vld [vmem:[%s12] sm:$0x3]
    %v1033 = vlaneseq
    %v1034 = vshrl.u32 %v1033, 7
    %v1035 = vsub.s32 0, %v1034
    %v1036 = vrot.slane %v1031, %v1035
    %v1037 = vlaneseq
    %v1038 = vshrl.u32 %v1037, 7
    %v1039 = vsub.s32 1, %v1038
    %v1040 = vrot.slane %v1031, %v1039
    %v1075 = vunpack.c.l.b16 %v999
    %v1076 = vunpack.c.h.b16 %v999
    %v1077 = vunpack.c.l.b16 %v1000
    %v1078 = vunpack.c.h.b16 %v1000
    %v1079 = vunpack.c.l.b16 %v1001
    %v1080 = vunpack.c.h.b16 %v1001
    %v1081 = vunpack.c.l.b16 %v1002
    %v1082 = vunpack.c.h.b16 %v1002
    %v1083 = vunpack.c.l.b16 %v1003
    %v1084 = vunpack.c.h.b16 %v1003
    %v1085 = vunpack.c.l.b16 %v1004
    %v1086 = vunpack.c.h.b16 %v1004
    %v1087 = vunpack.c.l.b16 %v1005
    %v1088 = vunpack.c.h.b16 %v1005
    %v1089 = vunpack.c.l.b16 %v1006
    %v1090 = vunpack.c.h.b16 %v1006
    %v1091 = vunpack.c.l.b16 %v1007
    %v1092 = vunpack.c.h.b16 %v1007
    %v1093 = vunpack.c.l.b16 %v1008
    %v1094 = vunpack.c.h.b16 %v1008
    %v1095 = vunpack.c.l.b16 %v1009
    %v1096 = vunpack.c.h.b16 %v1009
    %v1097 = vunpack.c.l.b16 %v1010
    %v1098 = vunpack.c.h.b16 %v1010
    %v1099 = vunpack.c.l.b16 %v1011
    %v1100 = vunpack.c.h.b16 %v1011
    %v1101 = vunpack.c.l.b16 %v1012
    %v1102 = vunpack.c.h.b16 %v1012
    %v1103 = vunpack.c.l.b16 %v1013
    %v1104 = vunpack.c.h.b16 %v1013
    %v1105 = vunpack.c.l.b16 %v1014
    %v1106 = vunpack.c.h.b16 %v1014
    %v1107 = vunpack.c.l.b16 %v1015
    %v1108 = vunpack.c.h.b16 %v1015
    %v1109 = vunpack.c.l.b16 %v1016
    %v1110 = vunpack.c.h.b16 %v1016
    %v1111 = vunpack.c.l.b16 %v1017
    %v1112 = vunpack.c.h.b16 %v1017
    %v1113 = vunpack.c.l.b16 %v1018
    %v1114 = vunpack.c.h.b16 %v1018
    %v1115 = vunpack.c.l.b16 %v1019
    %v1116 = vunpack.c.h.b16 %v1019
    %v1117 = vunpack.c.l.b16 %v1020
    %v1118 = vunpack.c.h.b16 %v1020
    %v1119 = vunpack.c.l.b16 %v1021
    %v1120 = vunpack.c.h.b16 %v1021
    %v1121 = vunpack.c.l.b16 %v1022
    %v1122 = vunpack.c.h.b16 %v1022
    %v1123 = vunpack.c.l.b16 %v1023
    %v1124 = vunpack.c.h.b16 %v1023
    %v1125 = vunpack.c.l.b16 %v1024
    %v1126 = vunpack.c.h.b16 %v1024
    %v1127 = vunpack.c.l.b16 %v1025
    %v1128 = vunpack.c.h.b16 %v1025
    %v1129 = vunpack.c.l.b16 %v1026
    %v1130 = vunpack.c.h.b16 %v1026
    %v1131 = vunpack.c.l.b16 %v1027
    %v1132 = vunpack.c.h.b16 %v1027
    %v1133 = vunpack.c.l.b16 %v1028
    %v1134 = vunpack.c.h.b16 %v1028
    %v1135 = vunpack.c.l.b16 %v1029
    %v1136 = vunpack.c.h.b16 %v1029
    %v1137 = vunpack.c.l.b16 %v1030
    %v1138 = vunpack.c.h.b16 %v1030
    %v1139 = vpack.c.b16 %v1077, %v1075
    %v1140 = vpack.c.b16 %v1078, %v1076
    %v1141 = vpack.c.b16 %v1081, %v1079
    %v1142 = vpack.c.b16 %v1082, %v1080
    %v1143 = vpack.c.b16 %v1085, %v1083
    %v1144 = vpack.c.b16 %v1086, %v1084
    %v1145 = vpack.c.b16 %v1089, %v1087
    %v1146 = vpack.c.b16 %v1090, %v1088
    %v1147 = vpack.c.b16 %v1093, %v1091
    %v1148 = vpack.c.b16 %v1094, %v1092
    %v1149 = vpack.c.b16 %v1097, %v1095
    %v1150 = vpack.c.b16 %v1098, %v1096
    %v1151 = vpack.c.b16 %v1101, %v1099
    %v1152 = vpack.c.b16 %v1102, %v1100
    %v1153 = vpack.c.b16 %v1105, %v1103
    %v1154 = vpack.c.b16 %v1106, %v1104
    %v1155 = vpack.c.b16 %v1109, %v1107
    %v1156 = vpack.c.b16 %v1110, %v1108
    %v1157 = vpack.c.b16 %v1113, %v1111
    %v1158 = vpack.c.b16 %v1114, %v1112
    %v1159 = vpack.c.b16 %v1117, %v1115
    %v1160 = vpack.c.b16 %v1118, %v1116
    %v1161 = vpack.c.b16 %v1121, %v1119
    %v1162 = vpack.c.b16 %v1122, %v1120
    %v1163 = vpack.c.b16 %v1125, %v1123
    %v1164 = vpack.c.b16 %v1126, %v1124
    %v1165 = vpack.c.b16 %v1129, %v1127
    %v1166 = vpack.c.b16 %v1130, %v1128
    %v1167 = vpack.c.b16 %v1133, %v1131
    %v1168 = vpack.c.b16 %v1134, %v1132
    %v1169 = vpack.c.b16 %v1137, %v1135
    %v1170 = vpack.c.b16 %v1138, %v1136
    %1203 = vmatprep.subr.bf16.mxu0 %v1140
    %1204 = vmatpush1.bf16.msra.mxu0 %v1139
    %1205 = vmatprep.subr.bf16.mxu0 %v1142
    %1206 = vmatpush1.bf16.msra.mxu0 %v1141
    %1207 = vmatprep.subr.bf16.mxu0 %v1144
    %1208 = vmatpush1.bf16.msra.mxu0 %v1143
    %1209 = vmatprep.subr.bf16.mxu0 %v1146
    %1210 = vmatpush1.bf16.msra.mxu0 %v1145
    %1211 = vmatprep.subr.bf16.mxu0 %v1148
    %1212 = vmatpush1.bf16.msra.mxu0 %v1147
    %1213 = vmatprep.subr.bf16.mxu0 %v1150
    %1214 = vmatpush1.bf16.msra.mxu0 %v1149
    %1215 = vmatprep.subr.bf16.mxu0 %v1152
    %1216 = vmatpush1.bf16.msra.mxu0 %v1151
    %1217 = vmatprep.subr.bf16.mxu0 %v1154
    %1218 = vmatpush1.bf16.msra.mxu0 %v1153
    %1219 = vmatprep.subr.bf16.mxu0 %v1156
    %1220 = vmatpush1.bf16.msra.mxu0 %v1155
    %1221 = vmatprep.subr.bf16.mxu0 %v1158
    %1222 = vmatpush1.bf16.msra.mxu0 %v1157
    %1223 = vmatprep.subr.bf16.mxu0 %v1160
    %1224 = vmatpush1.bf16.msra.mxu0 %v1159
    %1225 = vmatprep.subr.bf16.mxu0 %v1162
    %1226 = vmatpush1.bf16.msra.mxu0 %v1161
    %1227 = vmatprep.subr.bf16.mxu0 %v1164
    %1228 = vmatpush1.bf16.msra.mxu0 %v1163
    %1229 = vmatprep.subr.bf16.mxu0 %v1166
    %1230 = vmatpush1.bf16.msra.mxu0 %v1165
    %1231 = vmatprep.subr.bf16.mxu0 %v1168
    %1232 = vmatpush1.bf16.msra.mxu0 %v1167
    %1233 = vmatprep.subr.bf16.mxu0 %v1170
    %1234 = vmatpush1.bf16.msra.mxu0 %v1169
    %1235 = vmatprep.mubr.bf16.mxu0 %v998
    %1236 = vmatmul.mubr.bf16.gmra.mrb[0].mxu0 %v997
    %v1237 = vpop.f32.mrb[0].mxu0
    %v1238 = vadd.f32 %v1036, %v1237
    %v1239 = vpop.f32.mrb[0].mxu0
    %v1240 = vadd.f32 %v1040, %v1239
    %v1241 = vpop.f32.mrb[0].mxu0
    %v1242 = vadd.f32 %v1036, %v1241
    %v1243 = vpop.f32.mrb[0].mxu0
    %v1244 = vadd.f32 %v1040, %v1243
    %1245 = vdwg.mxu0
    %v1246 = vmax.f32 %v1238, 0.0
    %v1247 = vmax.f32 %v1240, 0.0
    %v1248 = vmax.f32 %v1242, 0.0
    %v1249 = vmax.f32 %v1244, 0.0
    %v1250 = vpack.c.bf16 %v1248, %v1246
    %v1251 = vpack.c.bf16 %v1249, %v1247
    %v1252 = vld [vmem:[#allocation9] sm:$0xff]
    %v1253 = vld [vmem:[#allocation9 + $0x8] sm:$0xff]
    %v1254 = vld [vmem:[#allocation9 + $0x10] sm:$0xff]
    %v1255 = vld [vmem:[#allocation9 + $0x18] sm:$0xff]
    %v1256 = vld [vmem:[#allocation9 + $0x20] sm:$0xff]
    %v1257 = vld [vmem:[#allocation9 + $0x28] sm:$0xff]
    %v1258 = vld [vmem:[#allocation9 + $0x30] sm:$0xff]
    %v1259 = vld [vmem:[#allocation9 + $0x38] sm:$0xff]
    %v1260 = vld [vmem:[#allocation9 + $0x40] sm:$0xff]
    %v1261 = vld [vmem:[#allocation9 + $0x48] sm:$0xff]
    %v1262 = vld [vmem:[#allocation9 + $0x50] sm:$0xff]
    %v1263 = vld [vmem:[#allocation9 + $0x58] sm:$0xff]
    %v1264 = vld [vmem:[#allocation9 + $0x60] sm:$0xff]
    %v1265 = vld [vmem:[#allocation9 + $0x68] sm:$0xff]
    %v1266 = vld [vmem:[#allocation9 + $0x70] sm:$0xff]
    %v1267 = vld [vmem:[#allocation9 + $0x78] sm:$0xff]
    %v1268 = vld [vmem:[#allocation9 + $0x80] sm:$0xff]
    %v1269 = vld [vmem:[#allocation9 + $0x88] sm:$0xff]
    %v1270 = vld [vmem:[#allocation9 + $0x90] sm:$0xff]
    %v1271 = vld [vmem:[#allocation9 + $0x98] sm:$0xff]
    %v1272 = vld [vmem:[#allocation9 + $0xa0] sm:$0xff]
    %v1273 = vld [vmem:[#allocation9 + $0xa8] sm:$0xff]
    %v1274 = vld [vmem:[#allocation9 + $0xb0] sm:$0xff]
    %v1275 = vld [vmem:[#allocation9 + $0xb8] sm:$0xff]
    %v1276 = vld [vmem:[#allocation9 + $0xc0] sm:$0xff]
    %v1277 = vld [vmem:[#allocation9 + $0xc8] sm:$0xff]
    %v1278 = vld [vmem:[#allocation9 + $0xd0] sm:$0xff]
    %v1279 = vld [vmem:[#allocation9 + $0xd8] sm:$0xff]
    %v1280 = vld [vmem:[#allocation9 + $0xe0] sm:$0xff]
    %v1281 = vld [vmem:[#allocation9 + $0xe8] sm:$0xff]
    %v1282 = vld [vmem:[#allocation9 + $0xf0] sm:$0xff]
    %v1283 = vld [vmem:[#allocation9 + $0xf8] sm:$0xff]
    %v1284 = vld [vmem:[%s13] sm:$0x3]
    %v1286 = vlaneseq
    %v1287 = vshrl.u32 %v1286, 7
    %v1288 = vsub.s32 0, %v1287
    %v1289 = vrot.slane %v1284, %v1288
    %v1290 = vlaneseq
    %v1291 = vshrl.u32 %v1290, 7
    %v1292 = vsub.s32 1, %v1291
    %v1293 = vrot.slane %v1284, %v1292
    %v1328 = vunpack.c.l.b16 %v1252
    %v1329 = vunpack.c.h.b16 %v1252
    %v1330 = vunpack.c.l.b16 %v1253
    %v1331 = vunpack.c.h.b16 %v1253
    %v1332 = vunpack.c.l.b16 %v1254
    %v1333 = vunpack.c.h.b16 %v1254
    %v1334 = vunpack.c.l.b16 %v1255
    %v1335 = vunpack.c.h.b16 %v1255
    %v1336 = vunpack.c.l.b16 %v1256
    %v1337 = vunpack.c.h.b16 %v1256
    %v1338 = vunpack.c.l.b16 %v1257
    %v1339 = vunpack.c.h.b16 %v1257
    %v1340 = vunpack.c.l.b16 %v1258
    %v1341 = vunpack.c.h.b16 %v1258
    %v1342 = vunpack.c.l.b16 %v1259
    %v1343 = vunpack.c.h.b16 %v1259
    %v1344 = vunpack.c.l.b16 %v1260
    %v1345 = vunpack.c.h.b16 %v1260
    %v1346 = vunpack.c.l.b16 %v1261
    %v1347 = vunpack.c.h.b16 %v1261
    %v1348 = vunpack.c.l.b16 %v1262
    %v1349 = vunpack.c.h.b16 %v1262
    %v1350 = vunpack.c.l.b16 %v1263
    %v1351 = vunpack.c.h.b16 %v1263
    %v1352 = vunpack.c.l.b16 %v1264
    %v1353 = vunpack.c.h.b16 %v1264
    %v1354 = vunpack.c.l.b16 %v1265
    %v1355 = vunpack.c.h.b16 %v1265
    %v1356 = vunpack.c.l.b16 %v1266
    %v1357 = vunpack.c.h.b16 %v1266
    %v1358 = vunpack.c.l.b16 %v1267
    %v1359 = vunpack.c.h.b16 %v1267
    %v1360 = vunpack.c.l.b16 %v1268
    %v1361 = vunpack.c.h.b16 %v1268
    %v1362 = vunpack.c.l.b16 %v1269
    %v1363 = vunpack.c.h.b16 %v1269
    %v1364 = vunpack.c.l.b16 %v1270
    %v1365 = vunpack.c.h.b16 %v1270
    %v1366 = vunpack.c.l.b16 %v1271
    %v1367 = vunpack.c.h.b16 %v1271
    %v1368 = vunpack.c.l.b16 %v1272
    %v1369 = vunpack.c.h.b16 %v1272
    %v1370 = vunpack.c.l.b16 %v1273
    %v1371 = vunpack.c.h.b16 %v1273
    %v1372 = vunpack.c.l.b16 %v1274
    %v1373 = vunpack.c.h.b16 %v1274
    %v1374 = vunpack.c.l.b16 %v1275
    %v1375 = vunpack.c.h.b16 %v1275
    %v1376 = vunpack.c.l.b16 %v1276
    %v1377 = vunpack.c.h.b16 %v1276
    %v1378 = vunpack.c.l.b16 %v1277
    %v1379 = vunpack.c.h.b16 %v1277
    %v1380 = vunpack.c.l.b16 %v1278
    %v1381 = vunpack.c.h.b16 %v1278
    %v1382 = vunpack.c.l.b16 %v1279
    %v1383 = vunpack.c.h.b16 %v1279
    %v1384 = vunpack.c.l.b16 %v1280
    %v1385 = vunpack.c.h.b16 %v1280
    %v1386 = vunpack.c.l.b16 %v1281
    %v1387 = vunpack.c.h.b16 %v1281
    %v1388 = vunpack.c.l.b16 %v1282
    %v1389 = vunpack.c.h.b16 %v1282
    %v1390 = vunpack.c.l.b16 %v1283
    %v1391 = vunpack.c.h.b16 %v1283
    %v1392 = vpack.c.b16 %v1330, %v1328
    %v1393 = vpack.c.b16 %v1331, %v1329
    %v1394 = vpack.c.b16 %v1334, %v1332
    %v1395 = vpack.c.b16 %v1335, %v1333
    %v1396 = vpack.c.b16 %v1338, %v1336
    %v1397 = vpack.c.b16 %v1339, %v1337
    %v1398 = vpack.c.b16 %v1342, %v1340
    %v1399 = vpack.c.b16 %v1343, %v1341
    %v1400 = vpack.c.b16 %v1346, %v1344
    %v1401 = vpack.c.b16 %v1347, %v1345
    %v1402 = vpack.c.b16 %v1350, %v1348
    %v1403 = vpack.c.b16 %v1351, %v1349
    %v1404 = vpack.c.b16 %v1354, %v1352
    %v1405 = vpack.c.b16 %v1355, %v1353
    %v1406 = vpack.c.b16 %v1358, %v1356
    %v1407 = vpack.c.b16 %v1359, %v1357
    %v1408 = vpack.c.b16 %v1362, %v1360
    %v1409 = vpack.c.b16 %v1363, %v1361
    %v1410 = vpack.c.b16 %v1366, %v1364
    %v1411 = vpack.c.b16 %v1367, %v1365
    %v1412 = vpack.c.b16 %v1370, %v1368
    %v1413 = vpack.c.b16 %v1371, %v1369
    %v1414 = vpack.c.b16 %v1374, %v1372
    %v1415 = vpack.c.b16 %v1375, %v1373
    %v1416 = vpack.c.b16 %v1378, %v1376
    %v1417 = vpack.c.b16 %v1379, %v1377
    %v1418 = vpack.c.b16 %v1382, %v1380
    %v1419 = vpack.c.b16 %v1383, %v1381
    %v1420 = vpack.c.b16 %v1386, %v1384
    %v1421 = vpack.c.b16 %v1387, %v1385
    %v1422 = vpack.c.b16 %v1390, %v1388
    %v1423 = vpack.c.b16 %v1391, %v1389
    %1456 = vmatprep.subr.bf16.mxu0 %v1393
    %1457 = vmatpush1.bf16.msra.mxu0 %v1392
    %1458 = vmatprep.subr.bf16.mxu0 %v1395
    %1459 = vmatpush1.bf16.msra.mxu0 %v1394
    %1460 = vmatprep.subr.bf16.mxu0 %v1397
    %1461 = vmatpush1.bf16.msra.mxu0 %v1396
    %1462 = vmatprep.subr.bf16.mxu0 %v1399
    %1463 = vmatpush1.bf16.msra.mxu0 %v1398
    %1464 = vmatprep.subr.bf16.mxu0 %v1401
    %1465 = vmatpush1.bf16.msra.mxu0 %v1400
    %1466 = vmatprep.subr.bf16.mxu0 %v1403
    %1467 = vmatpush1.bf16.msra.mxu0 %v1402
    %1468 = vmatprep.subr.bf16.mxu0 %v1405
    %1469 = vmatpush1.bf16.msra.mxu0 %v1404
    %1470 = vmatprep.subr.bf16.mxu0 %v1407
    %1471 = vmatpush1.bf16.msra.mxu0 %v1406
    %1472 = vmatprep.subr.bf16.mxu0 %v1409
    %1473 = vmatpush1.bf16.msra.mxu0 %v1408
    %1474 = vmatprep.subr.bf16.mxu0 %v1411
    %1475 = vmatpush1.bf16.msra.mxu0 %v1410
    %1476 = vmatprep.subr.bf16.mxu0 %v1413
    %1477 = vmatpush1.bf16.msra.mxu0 %v1412
    %1478 = vmatprep.subr.bf16.mxu0 %v1415
    %1479 = vmatpush1.bf16.msra.mxu0 %v1414
    %1480 = vmatprep.subr.bf16.mxu0 %v1417
    %1481 = vmatpush1.bf16.msra.mxu0 %v1416
    %1482 = vmatprep.subr.bf16.mxu0 %v1419
    %1483 = vmatpush1.bf16.msra.mxu0 %v1418
    %1484 = vmatprep.subr.bf16.mxu0 %v1421
    %1485 = vmatpush1.bf16.msra.mxu0 %v1420
    %1486 = vmatprep.subr.bf16.mxu0 %v1423
    %1487 = vmatpush1.bf16.msra.mxu0 %v1422
    %1488 = vmatprep.mubr.bf16.mxu0 %v1251
    %1489 = vmatmul.mubr.bf16.gmra.mrb[0].mxu0 %v1250
    %v1490 = vpop.f32.mrb[0].mxu0
    %v1491 = vadd.f32 %v1289, %v1490
    %v1492 = vpop.f32.mrb[0].mxu0
    %v1493 = vadd.f32 %v1293, %v1492
    %v1494 = vpop.f32.mrb[0].mxu0
    %v1495 = vadd.f32 %v1289, %v1494
    %v1496 = vpop.f32.mrb[0].mxu0
    %v1497 = vadd.f32 %v1293, %v1496
    %1498 = vdwg.mxu0
    %v1499 = vmax.f32 %v1491, 0.0
    %v1500 = vmax.f32 %v1493, 0.0
    %v1501 = vmax.f32 %v1495, 0.0
    %v1502 = vmax.f32 %v1497, 0.0
    %v1503 = vpack.c.bf16 %v1501, %v1499
    %v1504 = vpack.c.bf16 %v1502, %v1500
    %v1505 = vld [vmem:[#allocation10] sm:$0xff]
    %v1506 = vld [vmem:[#allocation10 + $0x8] sm:$0xff]
    %v1507 = vld [vmem:[#allocation10 + $0x10] sm:$0xff]
    %v1508 = vld [vmem:[#allocation10 + $0x18] sm:$0xff]
    %v1509 = vld [vmem:[#allocation10 + $0x20] sm:$0xff]
    %v1510 = vld [vmem:[#allocation10 + $0x28] sm:$0xff]
    %v1511 = vld [vmem:[#allocation10 + $0x30] sm:$0xff]
    %v1512 = vld [vmem:[#allocation10 + $0x38] sm:$0xff]
    %v1513 = vld [vmem:[#allocation10 + $0x40] sm:$0xff]
    %v1514 = vld [vmem:[#allocation10 + $0x48] sm:$0xff]
    %v1515 = vld [vmem:[#allocation10 + $0x50] sm:$0xff]
    %v1516 = vld [vmem:[#allocation10 + $0x58] sm:$0xff]
    %v1517 = vld [vmem:[#allocation10 + $0x60] sm:$0xff]
    %v1518 = vld [vmem:[#allocation10 + $0x68] sm:$0xff]
    %v1519 = vld [vmem:[#allocation10 + $0x70] sm:$0xff]
    %v1520 = vld [vmem:[#allocation10 + $0x78] sm:$0xff]
    %v1521 = vld [vmem:[#allocation10 + $0x80] sm:$0xff]
    %v1522 = vld [vmem:[#allocation10 + $0x88] sm:$0xff]
    %v1523 = vld [vmem:[#allocation10 + $0x90] sm:$0xff]
    %v1524 = vld [vmem:[#allocation10 + $0x98] sm:$0xff]
    %v1525 = vld [vmem:[#allocation10 + $0xa0] sm:$0xff]
    %v1526 = vld [vmem:[#allocation10 + $0xa8] sm:$0xff]
    %v1527 = vld [vmem:[#allocation10 + $0xb0] sm:$0xff]
    %v1528 = vld [vmem:[#allocation10 + $0xb8] sm:$0xff]
    %v1529 = vld [vmem:[#allocation10 + $0xc0] sm:$0xff]
    %v1530 = vld [vmem:[#allocation10 + $0xc8] sm:$0xff]
    %v1531 = vld [vmem:[#allocation10 + $0xd0] sm:$0xff]
    %v1532 = vld [vmem:[#allocation10 + $0xd8] sm:$0xff]
    %v1533 = vld [vmem:[#allocation10 + $0xe0] sm:$0xff]
    %v1534 = vld [vmem:[#allocation10 + $0xe8] sm:$0xff]
    %v1535 = vld [vmem:[#allocation10 + $0xf0] sm:$0xff]
    %v1536 = vld [vmem:[#allocation10 + $0xf8] sm:$0xff]
    %v1537 = vld [vmem:[%s14] sm:$0x3]
    %v1539 = vlaneseq
    %v1540 = vshrl.u32 %v1539, 7
    %v1541 = vsub.s32 0, %v1540
    %v1542 = vrot.slane %v1537, %v1541
    %v1543 = vlaneseq
    %v1544 = vshrl.u32 %v1543, 7
    %v1545 = vsub.s32 1, %v1544
    %v1546 = vrot.slane %v1537, %v1545
    %v1581 = vunpack.c.l.b16 %v1505
    %v1582 = vunpack.c.h.b16 %v1505
    %v1583 = vunpack.c.l.b16 %v1506
    %v1584 = vunpack.c.h.b16 %v1506
    %v1585 = vunpack.c.l.b16 %v1507
    %v1586 = vunpack.c.h.b16 %v1507
    %v1587 = vunpack.c.l.b16 %v1508
    %v1588 = vunpack.c.h.b16 %v1508
    %v1589 = vunpack.c.l.b16 %v1509
    %v1590 = vunpack.c.h.b16 %v1509
    %v1591 = vunpack.c.l.b16 %v1510
    %v1592 = vunpack.c.h.b16 %v1510
    %v1593 = vunpack.c.l.b16 %v1511
    %v1594 = vunpack.c.h.b16 %v1511
    %v1595 = vunpack.c.l.b16 %v1512
    %v1596 = vunpack.c.h.b16 %v1512
    %v1597 = vunpack.c.l.b16 %v1513
    %v1598 = vunpack.c.h.b16 %v1513
    %v1599 = vunpack.c.l.b16 %v1514
    %v1600 = vunpack.c.h.b16 %v1514
    %v1601 = vunpack.c.l.b16 %v1515
    %v1602 = vunpack.c.h.b16 %v1515
    %v1603 = vunpack.c.l.b16 %v1516
    %v1604 = vunpack.c.h.b16 %v1516
    %v1605 = vunpack.c.l.b16 %v1517
    %v1606 = vunpack.c.h.b16 %v1517
    %v1607 = vunpack.c.l.b16 %v1518
    %v1608 = vunpack.c.h.b16 %v1518
    %v1609 = vunpack.c.l.b16 %v1519
    %v1610 = vunpack.c.h.b16 %v1519
    %v1611 = vunpack.c.l.b16 %v1520
    %v1612 = vunpack.c.h.b16 %v1520
    %v1613 = vunpack.c.l.b16 %v1521
    %v1614 = vunpack.c.h.b16 %v1521
    %v1615 = vunpack.c.l.b16 %v1522
    %v1616 = vunpack.c.h.b16 %v1522
    %v1617 = vunpack.c.l.b16 %v1523
    %v1618 = vunpack.c.h.b16 %v1523
    %v1619 = vunpack.c.l.b16 %v1524
    %v1620 = vunpack.c.h.b16 %v1524
    %v1621 = vunpack.c.l.b16 %v1525
    %v1622 = vunpack.c.h.b16 %v1525
    %v1623 = vunpack.c.l.b16 %v1526
    %v1624 = vunpack.c.h.b16 %v1526
    %v1625 = vunpack.c.l.b16 %v1527
    %v1626 = vunpack.c.h.b16 %v1527
    %v1627 = vunpack.c.l.b16 %v1528
    %v1628 = vunpack.c.h.b16 %v1528
    %v1629 = vunpack.c.l.b16 %v1529
    %v1630 = vunpack.c.h.b16 %v1529
    %v1631 = vunpack.c.l.b16 %v1530
    %v1632 = vunpack.c.h.b16 %v1530
    %v1633 = vunpack.c.l.b16 %v1531
    %v1634 = vunpack.c.h.b16 %v1531
    %v1635 = vunpack.c.l.b16 %v1532
    %v1636 = vunpack.c.h.b16 %v1532
    %v1637 = vunpack.c.l.b16 %v1533
    %v1638 = vunpack.c.h.b16 %v1533
    %v1639 = vunpack.c.l.b16 %v1534
    %v1640 = vunpack.c.h.b16 %v1534
    %v1641 = vunpack.c.l.b16 %v1535
    %v1642 = vunpack.c.h.b16 %v1535
    %v1643 = vunpack.c.l.b16 %v1536
    %v1644 = vunpack.c.h.b16 %v1536
    %v1645 = vpack.c.b16 %v1583, %v1581
    %v1646 = vpack.c.b16 %v1584, %v1582
    %v1647 = vpack.c.b16 %v1587, %v1585
    %v1648 = vpack.c.b16 %v1588, %v1586
    %v1649 = vpack.c.b16 %v1591, %v1589
    %v1650 = vpack.c.b16 %v1592, %v1590
    %v1651 = vpack.c.b16 %v1595, %v1593
    %v1652 = vpack.c.b16 %v1596, %v1594
    %v1653 = vpack.c.b16 %v1599, %v1597
    %v1654 = vpack.c.b16 %v1600, %v1598
    %v1655 = vpack.c.b16 %v1603, %v1601
    %v1656 = vpack.c.b16 %v1604, %v1602
    %v1657 = vpack.c.b16 %v1607, %v1605
    %v1658 = vpack.c.b16 %v1608, %v1606
    %v1659 = vpack.c.b16 %v1611, %v1609
    %v1660 = vpack.c.b16 %v1612, %v1610
    %v1661 = vpack.c.b16 %v1615, %v1613
    %v1662 = vpack.c.b16 %v1616, %v1614
    %v1663 = vpack.c.b16 %v1619, %v1617
    %v1664 = vpack.c.b16 %v1620, %v1618
    %v1665 = vpack.c.b16 %v1623, %v1621
    %v1666 = vpack.c.b16 %v1624, %v1622
    %v1667 = vpack.c.b16 %v1627, %v1625
    %v1668 = vpack.c.b16 %v1628, %v1626
    %v1669 = vpack.c.b16 %v1631, %v1629
    %v1670 = vpack.c.b16 %v1632, %v1630
    %v1671 = vpack.c.b16 %v1635, %v1633
    %v1672 = vpack.c.b16 %v1636, %v1634
    %v1673 = vpack.c.b16 %v1639, %v1637
    %v1674 = vpack.c.b16 %v1640, %v1638
    %v1675 = vpack.c.b16 %v1643, %v1641
    %v1676 = vpack.c.b16 %v1644, %v1642
    %1709 = vmatprep.subr.bf16.mxu0 %v1646
    %1710 = vmatpush1.bf16.msra.mxu0 %v1645
    %1711 = vmatprep.subr.bf16.mxu0 %v1648
    %1712 = vmatpush1.bf16.msra.mxu0 %v1647
    %1713 = vmatprep.subr.bf16.mxu0 %v1650
    %1714 = vmatpush1.bf16.msra.mxu0 %v1649
    %1715 = vmatprep.subr.bf16.mxu0 %v1652
    %1716 = vmatpush1.bf16.msra.mxu0 %v1651
    %1717 = vmatprep.subr.bf16.mxu0 %v1654
    %1718 = vmatpush1.bf16.msra.mxu0 %v1653
    %1719 = vmatprep.subr.bf16.mxu0 %v1656
    %1720 = vmatpush1.bf16.msra.mxu0 %v1655
    %1721 = vmatprep.subr.bf16.mxu0 %v1658
    %1722 = vmatpush1.bf16.msra.mxu0 %v1657
    %1723 = vmatprep.subr.bf16.mxu0 %v1660
    %1724 = vmatpush1.bf16.msra.mxu0 %v1659
    %1725 = vmatprep.subr.bf16.mxu0 %v1662
    %1726 = vmatpush1.bf16.msra.mxu0 %v1661
    %1727 = vmatprep.subr.bf16.mxu0 %v1664
    %1728 = vmatpush1.bf16.msra.mxu0 %v1663
    %1729 = vmatprep.subr.bf16.mxu0 %v1666
    %1730 = vmatpush1.bf16.msra.mxu0 %v1665
    %1731 = vmatprep.subr.bf16.mxu0 %v1668
    %1732 = vmatpush1.bf16.msra.mxu0 %v1667
    %1733 = vmatprep.subr.bf16.mxu0 %v1670
    %1734 = vmatpush1.bf16.msra.mxu0 %v1669
    %1735 = vmatprep.subr.bf16.mxu0 %v1672
    %1736 = vmatpush1.bf16.msra.mxu0 %v1671
    %1737 = vmatprep.subr.bf16.mxu0 %v1674
    %1738 = vmatpush1.bf16.msra.mxu0 %v1673
    %1739 = vmatprep.subr.bf16.mxu0 %v1676
    %1740 = vmatpush1.bf16.msra.mxu0 %v1675
    %1741 = vmatprep.mubr.bf16.mxu0 %v1504
    %1742 = vmatmul.mubr.bf16.gmra.mrb[0].mxu0 %v1503
    %v1743 = vpop.f32.mrb[0].mxu0
    %v1744 = vadd.f32 %v1542, %v1743
    %v1745 = vpop.f32.mrb[0].mxu0
    %v1746 = vadd.f32 %v1546, %v1745
    %v1747 = vpop.f32.mrb[0].mxu0
    %v1748 = vadd.f32 %v1542, %v1747
    %v1749 = vpop.f32.mrb[0].mxu0
    %v1750 = vadd.f32 %v1546, %v1749
    %1751 = vdwg.mxu0
    %v1752 = vadd.f32 %v1744, %v463
    %v1753 = vadd.f32 %v1746, %v465
    %v1754 = vadd.f32 %v1748, %v467
    %v1755 = vadd.f32 %v1750, %v469
    %v1756 = vmax.f32 %v1752, 0.0
    %v1757 = vmax.f32 %v1753, 0.0
    %v1758 = vmax.f32 %v1754, 0.0
    %v1759 = vmax.f32 %v1755, 0.0
    %v1760 = vpack.c.bf16 %v1758, %v1756
    %v1761 = vpack.c.bf16 %v1759, %v1757
    %v1762 = vld [vmem:[#allocation12] sm:$0xff]
    %v1763 = vld [vmem:[#allocation12 + $0x8] sm:$0xff]
    %v1764 = vld [vmem:[#allocation12 + $0x10] sm:$0xff]
    %v1765 = vld [vmem:[#allocation12 + $0x18] sm:$0xff]
    %v1766 = vld [vmem:[#allocation12 + $0x20] sm:$0xff]
    %v1767 = vld [vmem:[#allocation12 + $0x28] sm:$0xff]
    %v1768 = vld [vmem:[#allocation12 + $0x30] sm:$0xff]
    %v1769 = vld [vmem:[#allocation12 + $0x38] sm:$0xff]
    %v1770 = vld [vmem:[#allocation12 + $0x40] sm:$0xff]
    %v1771 = vld [vmem:[#allocation12 + $0x48] sm:$0xff]
    %v1772 = vld [vmem:[#allocation12 + $0x50] sm:$0xff]
    %v1773 = vld [vmem:[#allocation12 + $0x58] sm:$0xff]
    %v1774 = vld [vmem:[#allocation12 + $0x60] sm:$0xff]
    %v1775 = vld [vmem:[#allocation12 + $0x68] sm:$0xff]
    %v1776 = vld [vmem:[#allocation12 + $0x70] sm:$0xff]
    %v1777 = vld [vmem:[#allocation12 + $0x78] sm:$0xff]
    %v1778 = vld [vmem:[#allocation12 + $0x80] sm:$0xff]
    %v1779 = vld [vmem:[#allocation12 + $0x88] sm:$0xff]
    %v1780 = vld [vmem:[#allocation12 + $0x90] sm:$0xff]
    %v1781 = vld [vmem:[#allocation12 + $0x98] sm:$0xff]
    %v1782 = vld [vmem:[#allocation12 + $0xa0] sm:$0xff]
    %v1783 = vld [vmem:[#allocation12 + $0xa8] sm:$0xff]
    %v1784 = vld [vmem:[#allocation12 + $0xb0] sm:$0xff]
    %v1785 = vld [vmem:[#allocation12 + $0xb8] sm:$0xff]
    %v1786 = vld [vmem:[#allocation12 + $0xc0] sm:$0xff]
    %v1787 = vld [vmem:[#allocation12 + $0xc8] sm:$0xff]
    %v1788 = vld [vmem:[#allocation12 + $0xd0] sm:$0xff]
    %v1789 = vld [vmem:[#allocation12 + $0xd8] sm:$0xff]
    %v1790 = vld [vmem:[#allocation12 + $0xe0] sm:$0xff]
    %v1791 = vld [vmem:[#allocation12 + $0xe8] sm:$0xff]
    %v1792 = vld [vmem:[#allocation12 + $0xf0] sm:$0xff]
    %v1793 = vld [vmem:[#allocation12 + $0xf8] sm:$0xff]
    %v1794 = vld [vmem:[%s15] sm:$0x3]
    %v1796 = vlaneseq
    %v1797 = vshrl.u32 %v1796, 7
    %v1798 = vsub.s32 0, %v1797
    %v1799 = vrot.slane %v1794, %v1798
    %v1800 = vlaneseq
    %v1801 = vshrl.u32 %v1800, 7
    %v1802 = vsub.s32 1, %v1801
    %v1803 = vrot.slane %v1794, %v1802
    %v1838 = vunpack.c.l.b16 %v1762
    %v1839 = vunpack.c.h.b16 %v1762
    %v1840 = vunpack.c.l.b16 %v1763
    %v1841 = vunpack.c.h.b16 %v1763
    %v1842 = vunpack.c.l.b16 %v1764
    %v1843 = vunpack.c.h.b16 %v1764
    %v1844 = vunpack.c.l.b16 %v1765
    %v1845 = vunpack.c.h.b16 %v1765
    %v1846 = vunpack.c.l.b16 %v1766
    %v1847 = vunpack.c.h.b16 %v1766
    %v1848 = vunpack.c.l.b16 %v1767
    %v1849 = vunpack.c.h.b16 %v1767
    %v1850 = vunpack.c.l.b16 %v1768
    %v1851 = vunpack.c.h.b16 %v1768
    %v1852 = vunpack.c.l.b16 %v1769
    %v1853 = vunpack.c.h.b16 %v1769
    %v1854 = vunpack.c.l.b16 %v1770
    %v1855 = vunpack.c.h.b16 %v1770
    %v1856 = vunpack.c.l.b16 %v1771
    %v1857 = vunpack.c.h.b16 %v1771
    %v1858 = vunpack.c.l.b16 %v1772
    %v1859 = vunpack.c.h.b16 %v1772
    %v1860 = vunpack.c.l.b16 %v1773
    %v1861 = vunpack.c.h.b16 %v1773
    %v1862 = vunpack.c.l.b16 %v1774
    %v1863 = vunpack.c.h.b16 %v1774
    %v1864 = vunpack.c.l.b16 %v1775
    %v1865 = vunpack.c.h.b16 %v1775
    %v1866 = vunpack.c.l.b16 %v1776
    %v1867 = vunpack.c.h.b16 %v1776
    %v1868 = vunpack.c.l.b16 %v1777
    %v1869 = vunpack.c.h.b16 %v1777
    %v1870 = vunpack.c.l.b16 %v1778
    %v1871 = vunpack.c.h.b16 %v1778
    %v1872 = vunpack.c.l.b16 %v1779
    %v1873 = vunpack.c.h.b16 %v1779
    %v1874 = vunpack.c.l.b16 %v1780
    %v1875 = vunpack.c.h.b16 %v1780
    %v1876 = vunpack.c.l.b16 %v1781
    %v1877 = vunpack.c.h.b16 %v1781
    %v1878 = vunpack.c.l.b16 %v1782
    %v1879 = vunpack.c.h.b16 %v1782
    %v1880 = vunpack.c.l.b16 %v1783
    %v1881 = vunpack.c.h.b16 %v1783
    %v1882 = vunpack.c.l.b16 %v1784
    %v1883 = vunpack.c.h.b16 %v1784
    %v1884 = vunpack.c.l.b16 %v1785
    %v1885 = vunpack.c.h.b16 %v1785
    %v1886 = vunpack.c.l.b16 %v1786
    %v1887 = vunpack.c.h.b16 %v1786
    %v1888 = vunpack.c.l.b16 %v1787
    %v1889 = vunpack.c.h.b16 %v1787
    %v1890 = vunpack.c.l.b16 %v1788
    %v1891 = vunpack.c.h.b16 %v1788
    %v1892 = vunpack.c.l.b16 %v1789
    %v1893 = vunpack.c.h.b16 %v1789
    %v1894 = vunpack.c.l.b16 %v1790
    %v1895 = vunpack.c.h.b16 %v1790
    %v1896 = vunpack.c.l.b16 %v1791
    %v1897 = vunpack.c.h.b16 %v1791
    %v1898 = vunpack.c.l.b16 %v1792
    %v1899 = vunpack.c.h.b16 %v1792
    %v1900 = vunpack.c.l.b16 %v1793
    %v1901 = vunpack.c.h.b16 %v1793
    %v1902 = vpack.c.b16 %v1840, %v1838
    %v1903 = vpack.c.b16 %v1841, %v1839
    %v1904 = vpack.c.b16 %v1844, %v1842
    %v1905 = vpack.c.b16 %v1845, %v1843
    %v1906 = vpack.c.b16 %v1848, %v1846
    %v1907 = vpack.c.b16 %v1849, %v1847
    %v1908 = vpack.c.b16 %v1852, %v1850
    %v1909 = vpack.c.b16 %v1853, %v1851
    %v1910 = vpack.c.b16 %v1856, %v1854
    %v1911 = vpack.c.b16 %v1857, %v1855
    %v1912 = vpack.c.b16 %v1860, %v1858
    %v1913 = vpack.c.b16 %v1861, %v1859
    %v1914 = vpack.c.b16 %v1864, %v1862
    %v1915 = vpack.c.b16 %v1865, %v1863
    %v1916 = vpack.c.b16 %v1868, %v1866
    %v1917 = vpack.c.b16 %v1869, %v1867
    %v1918 = vpack.c.b16 %v1872, %v1870
    %v1919 = vpack.c.b16 %v1873, %v1871
    %v1920 = vpack.c.b16 %v1876, %v1874
    %v1921 = vpack.c.b16 %v1877, %v1875
    %v1922 = vpack.c.b16 %v1880, %v1878
    %v1923 = vpack.c.b16 %v1881, %v1879
    %v1924 = vpack.c.b16 %v1884, %v1882
    %v1925 = vpack.c.b16 %v1885, %v1883
    %v1926 = vpack.c.b16 %v1888, %v1886
    %v1927 = vpack.c.b16 %v1889, %v1887
    %v1928 = vpack.c.b16 %v1892, %v1890
    %v1929 = vpack.c.b16 %v1893, %v1891
    %v1930 = vpack.c.b16 %v1896, %v1894
    %v1931 = vpack.c.b16 %v1897, %v1895
    %v1932 = vpack.c.b16 %v1900, %v1898
    %v1933 = vpack.c.b16 %v1901, %v1899
    %1966 = vmatprep.subr.bf16.mxu0 %v1903
    %1967 = vmatpush1.bf16.msra.mxu0 %v1902
    %1968 = vmatprep.subr.bf16.mxu0 %v1905
    %1969 = vmatpush1.bf16.msra.mxu0 %v1904
    %1970 = vmatprep.subr.bf16.mxu0 %v1907
    %1971 = vmatpush1.bf16.msra.mxu0 %v1906
    %1972 = vmatprep.subr.bf16.mxu0 %v1909
    %1973 = vmatpush1.bf16.msra.mxu0 %v1908
    %1974 = vmatprep.subr.bf16.mxu0 %v1911
    %1975 = vmatpush1.bf16.msra.mxu0 %v1910
    %1976 = vmatprep.subr.bf16.mxu0 %v1913
    %1977 = vmatpush1.bf16.msra.mxu0 %v1912
    %1978 = vmatprep.subr.bf16.mxu0 %v1915
    %1979 = vmatpush1.bf16.msra.mxu0 %v1914
    %1980 = vmatprep.subr.bf16.mxu0 %v1917
    %1981 = vmatpush1.bf16.msra.mxu0 %v1916
    %1982 = vmatprep.subr.bf16.mxu0 %v1919
    %1983 = vmatpush1.bf16.msra.mxu0 %v1918
    %1984 = vmatprep.subr.bf16.mxu0 %v1921
    %1985 = vmatpush1.bf16.msra.mxu0 %v1920
    %1986 = vmatprep.subr.bf16.mxu0 %v1923
    %1987 = vmatpush1.bf16.msra.mxu0 %v1922
    %1988 = vmatprep.subr.bf16.mxu0 %v1925
    %1989 = vmatpush1.bf16.msra.mxu0 %v1924
    %1990 = vmatprep.subr.bf16.mxu0 %v1927
    %1991 = vmatpush1.bf16.msra.mxu0 %v1926
    %1992 = vmatprep.subr.bf16.mxu0 %v1929
    %1993 = vmatpush1.bf16.msra.mxu0 %v1928
    %1994 = vmatprep.subr.bf16.mxu0 %v1931
    %1995 = vmatpush1.bf16.msra.mxu0 %v1930
    %1996 = vmatprep.subr.bf16.mxu0 %v1933
    %1997 = vmatpush1.bf16.msra.mxu0 %v1932
    %1998 = vmatprep.mubr.bf16.mxu0 %v1761
    %1999 = vmatmul.mubr.bf16.gmra.mrb[0].mxu0 %v1760
    %v2000 = vpop.f32.mrb[0].mxu0
    %v2001 = vadd.f32 %v1799, %v2000
    %v2002 = vpop.f32.mrb[0].mxu0
    %v2003 = vadd.f32 %v1803, %v2002
    %v2004 = vpop.f32.mrb[0].mxu0
    %v2005 = vadd.f32 %v1799, %v2004
    %v2006 = vpop.f32.mrb[0].mxu0
    %v2007 = vadd.f32 %v1803, %v2006
    %2008 = vdwg.mxu0
    %v2009 = vmax.f32 %v2001, 0.0
    %v2010 = vmax.f32 %v2003, 0.0
    %v2011 = vmax.f32 %v2005, 0.0
    %v2012 = vmax.f32 %v2007, 0.0
    %v2013 = vpack.c.bf16 %v2011, %v2009
    %v2014 = vpack.c.bf16 %v2012, %v2010
    %v2015 = vld [vmem:[#allocation13] sm:$0xff]
    %v2016 = vld [vmem:[#allocation13 + $0x8] sm:$0xff]
    %v2017 = vld [vmem:[#allocation13 + $0x10] sm:$0xff]
    %v2018 = vld [vmem:[#allocation13 + $0x18] sm:$0xff]
    %v2019 = vld [vmem:[#allocation13 + $0x20] sm:$0xff]
    %v2020 = vld [vmem:[#allocation13 + $0x28] sm:$0xff]
    %v2021 = vld [vmem:[#allocation13 + $0x30] sm:$0xff]
    %v2022 = vld [vmem:[#allocation13 + $0x38] sm:$0xff]
    %v2023 = vld [vmem:[#allocation13 + $0x40] sm:$0xff]
    %v2024 = vld [vmem:[#allocation13 + $0x48] sm:$0xff]
    %v2025 = vld [vmem:[#allocation13 + $0x50] sm:$0xff]
    %v2026 = vld [vmem:[#allocation13 + $0x58] sm:$0xff]
    %v2027 = vld [vmem:[#allocation13 + $0x60] sm:$0xff]
    %v2028 = vld [vmem:[#allocation13 + $0x68] sm:$0xff]
    %v2029 = vld [vmem:[#allocation13 + $0x70] sm:$0xff]
    %v2030 = vld [vmem:[#allocation13 + $0x78] sm:$0xff]
    %v2031 = vld [vmem:[#allocation13 + $0x80] sm:$0xff]
    %v2032 = vld [vmem:[#allocation13 + $0x88] sm:$0xff]
    %v2033 = vld [vmem:[#allocation13 + $0x90] sm:$0xff]
    %v2034 = vld [vmem:[#allocation13 + $0x98] sm:$0xff]
    %v2035 = vld [vmem:[#allocation13 + $0xa0] sm:$0xff]
    %v2036 = vld [vmem:[#allocation13 + $0xa8] sm:$0xff]
    %v2037 = vld [vmem:[#allocation13 + $0xb0] sm:$0xff]
    %v2038 = vld [vmem:[#allocation13 + $0xb8] sm:$0xff]
    %v2039 = vld [vmem:[#allocation13 + $0xc0] sm:$0xff]
    %v2040 = vld [vmem:[#allocation13 + $0xc8] sm:$0xff]
    %v2041 = vld [vmem:[#allocation13 + $0xd0] sm:$0xff]
    %v2042 = vld [vmem:[#allocation13 + $0xd8] sm:$0xff]
    %v2043 = vld [vmem:[#allocation13 + $0xe0] sm:$0xff]
    %v2044 = vld [vmem:[#allocation13 + $0xe8] sm:$0xff]
    %v2045 = vld [vmem:[#allocation13 + $0xf0] sm:$0xff]
    %v2046 = vld [vmem:[#allocation13 + $0xf8] sm:$0xff]
    %v2047 = vld [vmem:[%s16] sm:$0x3]
    %v2049 = vlaneseq
    %v2050 = vshrl.u32 %v2049, 7
    %v2051 = vsub.s32 0, %v2050
    %v2052 = vrot.slane %v2047, %v2051
    %v2053 = vlaneseq
    %v2054 = vshrl.u32 %v2053, 7
    %v2055 = vsub.s32 1, %v2054
    %v2056 = vrot.slane %v2047, %v2055
    %v2091 = vunpack.c.l.b16 %v2015
    %v2092 = vunpack.c.h.b16 %v2015
    %v2093 = vunpack.c.l.b16 %v2016
    %v2094 = vunpack.c.h.b16 %v2016
    %v2095 = vunpack.c.l.b16 %v2017
    %v2096 = vunpack.c.h.b16 %v2017
    %v2097 = vunpack.c.l.b16 %v2018
    %v2098 = vunpack.c.h.b16 %v2018
    %v2099 = vunpack.c.l.b16 %v2019
    %v2100 = vunpack.c.h.b16 %v2019
    %v2101 = vunpack.c.l.b16 %v2020
    %v2102 = vunpack.c.h.b16 %v2020
    %v2103 = vunpack.c.l.b16 %v2021
    %v2104 = vunpack.c.h.b16 %v2021
    %v2105 = vunpack.c.l.b16 %v2022
    %v2106 = vunpack.c.h.b16 %v2022
    %v2107 = vunpack.c.l.b16 %v2023
    %v2108 = vunpack.c.h.b16 %v2023
    %v2109 = vunpack.c.l.b16 %v2024
    %v2110 = vunpack.c.h.b16 %v2024
    %v2111 = vunpack.c.l.b16 %v2025
    %v2112 = vunpack.c.h.b16 %v2025
    %v2113 = vunpack.c.l.b16 %v2026
    %v2114 = vunpack.c.h.b16 %v2026
    %v2115 = vunpack.c.l.b16 %v2027
    %v2116 = vunpack.c.h.b16 %v2027
    %v2117 = vunpack.c.l.b16 %v2028
    %v2118 = vunpack.c.h.b16 %v2028
    %v2119 = vunpack.c.l.b16 %v2029
    %v2120 = vunpack.c.h.b16 %v2029
    %v2121 = vunpack.c.l.b16 %v2030
    %v2122 = vunpack.c.h.b16 %v2030
    %v2123 = vunpack.c.l.b16 %v2031
    %v2124 = vunpack.c.h.b16 %v2031
    %v2125 = vunpack.c.l.b16 %v2032
    %v2126 = vunpack.c.h.b16 %v2032
    %v2127 = vunpack.c.l.b16 %v2033
    %v2128 = vunpack.c.h.b16 %v2033
    %v2129 = vunpack.c.l.b16 %v2034
    %v2130 = vunpack.c.h.b16 %v2034
    %v2131 = vunpack.c.l.b16 %v2035
    %v2132 = vunpack.c.h.b16 %v2035
    %v2133 = vunpack.c.l.b16 %v2036
    %v2134 = vunpack.c.h.b16 %v2036
    %v2135 = vunpack.c.l.b16 %v2037
    %v2136 = vunpack.c.h.b16 %v2037
    %v2137 = vunpack.c.l.b16 %v2038
    %v2138 = vunpack.c.h.b16 %v2038
    %v2139 = vunpack.c.l.b16 %v2039
    %v2140 = vunpack.c.h.b16 %v2039
    %v2141 = vunpack.c.l.b16 %v2040
    %v2142 = vunpack.c.h.b16 %v2040
    %v2143 = vunpack.c.l.b16 %v2041
    %v2144 = vunpack.c.h.b16 %v2041
    %v2145 = vunpack.c.l.b16 %v2042
    %v2146 = vunpack.c.h.b16 %v2042
    %v2147 = vunpack.c.l.b16 %v2043
    %v2148 = vunpack.c.h.b16 %v2043
    %v2149 = vunpack.c.l.b16 %v2044
    %v2150 = vunpack.c.h.b16 %v2044
    %v2151 = vunpack.c.l.b16 %v2045
    %v2152 = vunpack.c.h.b16 %v2045
    %v2153 = vunpack.c.l.b16 %v2046
    %v2154 = vunpack.c.h.b16 %v2046
    %v2155 = vpack.c.b16 %v2093, %v2091
    %v2156 = vpack.c.b16 %v2094, %v2092
    %v2157 = vpack.c.b16 %v2097, %v2095
    %v2158 = vpack.c.b16 %v2098, %v2096
    %v2159 = vpack.c.b16 %v2101, %v2099
    %v2160 = vpack.c.b16 %v2102, %v2100
    %v2161 = vpack.c.b16 %v2105, %v2103
    %v2162 = vpack.c.b16 %v2106, %v2104
    %v2163 = vpack.c.b16 %v2109, %v2107
    %v2164 = vpack.c.b16 %v2110, %v2108
    %v2165 = vpack.c.b16 %v2113, %v2111
    %v2166 = vpack.c.b16 %v2114, %v2112
    %v2167 = vpack.c.b16 %v2117, %v2115
    %v2168 = vpack.c.b16 %v2118, %v2116
    %v2169 = vpack.c.b16 %v2121, %v2119
    %v2170 = vpack.c.b16 %v2122, %v2120
    %v2171 = vpack.c.b16 %v2125, %v2123
    %v2172 = vpack.c.b16 %v2126, %v2124
    %v2173 = vpack.c.b16 %v2129, %v2127
    %v2174 = vpack.c.b16 %v2130, %v2128
    %v2175 = vpack.c.b16 %v2133, %v2131
    %v2176 = vpack.c.b16 %v2134, %v2132
    %v2177 = vpack.c.b16 %v2137, %v2135
    %v2178 = vpack.c.b16 %v2138, %v2136
    %v2179 = vpack.c.b16 %v2141, %v2139
    %v2180 = vpack.c.b16 %v2142, %v2140
    %v2181 = vpack.c.b16 %v2145, %v2143
    %v2182 = vpack.c.b16 %v2146, %v2144
    %v2183 = vpack.c.b16 %v2149, %v2147
    %v2184 = vpack.c.b16 %v2150, %v2148
    %v2185 = vpack.c.b16 %v2153, %v2151
    %v2186 = vpack.c.b16 %v2154, %v2152
    %2219 = vmatprep.subr.bf16.mxu0 %v2156
    %2220 = vmatpush1.bf16.msra.mxu0 %v2155
    %2221 = vmatprep.subr.bf16.mxu0 %v2158
    %2222 = vmatpush1.bf16.msra.mxu0 %v2157
    %2223 = vmatprep.subr.bf16.mxu0 %v2160
    %2224 = vmatpush1.bf16.msra.mxu0 %v2159
    %2225 = vmatprep.subr.bf16.mxu0 %v2162
    %2226 = vmatpush1.bf16.msra.mxu0 %v2161
    %2227 = vmatprep.subr.bf16.mxu0 %v2164
    %2228 = vmatpush1.bf16.msra.mxu0 %v2163
    %2229 = vmatprep.subr.bf16.mxu0 %v2166
    %2230 = vmatpush1.bf16.msra.mxu0 %v2165
    %2231 = vmatprep.subr.bf16.mxu0 %v2168
    %2232 = vmatpush1.bf16.msra.mxu0 %v2167
    %2233 = vmatprep.subr.bf16.mxu0 %v2170
    %2234 = vmatpush1.bf16.msra.mxu0 %v2169
    %2235 = vmatprep.subr.bf16.mxu0 %v2172
    %2236 = vmatpush1.bf16.msra.mxu0 %v2171
    %2237 = vmatprep.subr.bf16.mxu0 %v2174
    %2238 = vmatpush1.bf16.msra.mxu0 %v2173
    %2239 = vmatprep.subr.bf16.mxu0 %v2176
    %2240 = vmatpush1.bf16.msra.mxu0 %v2175
    %2241 = vmatprep.subr.bf16.mxu0 %v2178
    %2242 = vmatpush1.bf16.msra.mxu0 %v2177
    %2243 = vmatprep.subr.bf16.mxu0 %v2180
    %2244 = vmatpush1.bf16.msra.mxu0 %v2179
    %2245 = vmatprep.subr.bf16.mxu0 %v2182
    %2246 = vmatpush1.bf16.msra.mxu0 %v2181
    %2247 = vmatprep.subr.bf16.mxu0 %v2184
    %2248 = vmatpush1.bf16.msra.mxu0 %v2183
    %2249 = vmatprep.subr.bf16.mxu0 %v2186
    %2250 = vmatpush1.bf16.msra.mxu0 %v2185
    %2251 = vmatprep.mubr.bf16.mxu0 %v2014
    %2252 = vmatmul.mubr.bf16.gmra.mrb[0].mxu0 %v2013
    %v2253 = vpop.f32.mrb[0].mxu0
    %v2254 = vadd.f32 %v2052, %v2253
    %v2255 = vpop.f32.mrb[0].mxu0
    %v2256 = vadd.f32 %v2056, %v2255
    %v2257 = vpop.f32.mrb[0].mxu0
    %v2258 = vadd.f32 %v2052, %v2257
    %v2259 = vpop.f32.mrb[0].mxu0
    %v2260 = vadd.f32 %v2056, %v2259
    %2261 = vdwg.mxu0
    %v2262 = vmax.f32 %v2254, 0.0
    %v2263 = vmax.f32 %v2256, 0.0
    %v2264 = vmax.f32 %v2258, 0.0
    %v2265 = vmax.f32 %v2260, 0.0
    %v2266 = vpack.c.bf16 %v2264, %v2262
    %v2267 = vpack.c.bf16 %v2265, %v2263
    %v2268 = vld [vmem:[#allocation15] sm:$0xf]
    %v2269 = vld [vmem:[#allocation15 + $0x4] sm:$0xf]
    %v2270 = vld [vmem:[#allocation15 + $0x8] sm:$0xf]
    %v2271 = vld [vmem:[#allocation15 + $0xc] sm:$0xf]
    %v2272 = vld [vmem:[#allocation15 + $0x10] sm:$0xf]
    %v2273 = vld [vmem:[#allocation15 + $0x14] sm:$0xf]
    %v2274 = vld [vmem:[#allocation15 + $0x18] sm:$0xf]
    %v2275 = vld [vmem:[#allocation15 + $0x1c] sm:$0xf]
    %v2276 = vld [vmem:[#allocation15 + $0x20] sm:$0xf]
    %v2277 = vld [vmem:[#allocation15 + $0x24] sm:$0xf]
    %v2278 = vld [vmem:[#allocation15 + $0x28] sm:$0xf]
    %v2279 = vld [vmem:[#allocation15 + $0x2c] sm:$0xf]
    %v2280 = vld [vmem:[#allocation15 + $0x30] sm:$0xf]
    %v2281 = vld [vmem:[#allocation15 + $0x34] sm:$0xf]
    %v2282 = vld [vmem:[#allocation15 + $0x38] sm:$0xf]
    %v2283 = vld [vmem:[#allocation15 + $0x3c] sm:$0xf]
    %v2284 = vld [vmem:[#allocation15 + $0x40] sm:$0xf]
    %v2285 = vld [vmem:[#allocation15 + $0x44] sm:$0xf]
    %v2286 = vld [vmem:[#allocation15 + $0x48] sm:$0xf]
    %v2287 = vld [vmem:[#allocation15 + $0x4c] sm:$0xf]
    %v2288 = vld [vmem:[#allocation15 + $0x50] sm:$0xf]
    %v2289 = vld [vmem:[#allocation15 + $0x54] sm:$0xf]
    %v2290 = vld [vmem:[#allocation15 + $0x58] sm:$0xf]
    %v2291 = vld [vmem:[#allocation15 + $0x5c] sm:$0xf]
    %v2292 = vld [vmem:[#allocation15 + $0x60] sm:$0xf]
    %v2293 = vld [vmem:[#allocation15 + $0x64] sm:$0xf]
    %v2294 = vld [vmem:[#allocation15 + $0x68] sm:$0xf]
    %v2295 = vld [vmem:[#allocation15 + $0x6c] sm:$0xf]
    %v2296 = vld [vmem:[#allocation15 + $0x70] sm:$0xf]
    %v2297 = vld [vmem:[#allocation15 + $0x74] sm:$0xf]
    %v2298 = vld [vmem:[#allocation15 + $0x78] sm:$0xf]
    %v2299 = vld [vmem:[#allocation15 + $0x7c] sm:$0xf]
    %v2300 = vld [vmem:[%s18] sm:$0x1]
    %v2302 = vlaneseq
    %v2303 = vshrl.u32 %v2302, 7
    %v2304 = vsub.s32 0, %v2303
    %v2305 = vrot.slane %v2300, %v2304
    %v2339 = vunpack.c.l.b16 %v2268
    %v2340 = vunpack.c.l.b16 %v2269
    %v2341 = vunpack.c.l.b16 %v2270
    %v2342 = vunpack.c.l.b16 %v2271
    %v2343 = vunpack.c.l.b16 %v2272
    %v2344 = vunpack.c.l.b16 %v2273
    %v2345 = vunpack.c.l.b16 %v2274
    %v2346 = vunpack.c.l.b16 %v2275
    %v2347 = vunpack.c.l.b16 %v2276
    %v2348 = vunpack.c.l.b16 %v2277
    %v2349 = vunpack.c.l.b16 %v2278
    %v2350 = vunpack.c.l.b16 %v2279
    %v2351 = vunpack.c.l.b16 %v2280
    %v2352 = vunpack.c.l.b16 %v2281
    %v2353 = vunpack.c.l.b16 %v2282
    %v2354 = vunpack.c.l.b16 %v2283
    %v2355 = vunpack.c.l.b16 %v2284
    %v2356 = vunpack.c.l.b16 %v2285
    %v2357 = vunpack.c.l.b16 %v2286
    %v2358 = vunpack.c.l.b16 %v2287
    %v2359 = vunpack.c.l.b16 %v2288
    %v2360 = vunpack.c.l.b16 %v2289
    %v2361 = vunpack.c.l.b16 %v2290
    %v2362 = vunpack.c.l.b16 %v2291
    %v2363 = vunpack.c.l.b16 %v2292
    %v2364 = vunpack.c.l.b16 %v2293
    %v2365 = vunpack.c.l.b16 %v2294
    %v2366 = vunpack.c.l.b16 %v2295
    %v2367 = vunpack.c.l.b16 %v2296
    %v2368 = vunpack.c.l.b16 %v2297
    %v2369 = vunpack.c.l.b16 %v2298
    %v2370 = vunpack.c.l.b16 %v2299
    %v2371 = vpack.c.b16 %v2340, %v2339
    %v2372 = vpack.c.b16 %v2342, %v2341
    %v2373 = vpack.c.b16 %v2344, %v2343
    %v2374 = vpack.c.b16 %v2346, %v2345
    %v2375 = vpack.c.b16 %v2348, %v2347
    %v2376 = vpack.c.b16 %v2350, %v2349
    %v2377 = vpack.c.b16 %v2352, %v2351
    %v2378 = vpack.c.b16 %v2354, %v2353
    %v2379 = vpack.c.b16 %v2356, %v2355
    %v2380 = vpack.c.b16 %v2358, %v2357
    %v2381 = vpack.c.b16 %v2360, %v2359
    %v2382 = vpack.c.b16 %v2362, %v2361
    %v2383 = vpack.c.b16 %v2364, %v2363
    %v2384 = vpack.c.b16 %v2366, %v2365
    %v2385 = vpack.c.b16 %v2368, %v2367
    %v2386 = vpack.c.b16 %v2370, %v2369
    %2403 = vmatprep.subr.bf16.mxu0 0
    %2404 = vmatpush1.bf16.msra.mxu0 %v2371
    %2405 = vmatprep.subr.bf16.mxu0 0
    %2406 = vmatpush1.bf16.msra.mxu0 %v2372
    %2407 = vmatprep.subr.bf16.mxu0 0
    %2408 = vmatpush1.bf16.msra.mxu0 %v2373
    %2409 = vmatprep.subr.bf16.mxu0 0
    %2410 = vmatpush1.bf16.msra.mxu0 %v2374
    %2411 = vmatprep.subr.bf16.mxu0 0
    %2412 = vmatpush1.bf16.msra.mxu0 %v2375
    %2413 = vmatprep.subr.bf16.mxu0 0
    %2414 = vmatpush1.bf16.msra.mxu0 %v2376
    %2415 = vmatprep.subr.bf16.mxu0 0
    %2416 = vmatpush1.bf16.msra.mxu0 %v2377
    %2417 = vmatprep.subr.bf16.mxu0 0
    %2418 = vmatpush1.bf16.msra.mxu0 %v2378
    %2419 = vmatprep.subr.bf16.mxu0 0
    %2420 = vmatpush1.bf16.msra.mxu0 %v2379
    %2421 = vmatprep.subr.bf16.mxu0 0
    %2422 = vmatpush1.bf16.msra.mxu0 %v2380
    %2423 = vmatprep.subr.bf16.mxu0 0
    %2424 = vmatpush1.bf16.msra.mxu0 %v2381
    %2425 = vmatprep.subr.bf16.mxu0 0
    %2426 = vmatpush1.bf16.msra.mxu0 %v2382
    %2427 = vmatprep.subr.bf16.mxu0 0
    %2428 = vmatpush1.bf16.msra.mxu0 %v2383
    %2429 = vmatprep.subr.bf16.mxu0 0
    %2430 = vmatpush1.bf16.msra.mxu0 %v2384
    %2431 = vmatprep.subr.bf16.mxu0 0
    %2432 = vmatpush1.bf16.msra.mxu0 %v2385
    %2433 = vmatprep.subr.bf16.mxu0 0
    %2434 = vmatpush1.bf16.msra.mxu0 %v2386
    %2435 = vmatprep.mubr.bf16.mxu0 %v2267
    %2436 = vmatmul.mubr.bf16.gmra.mrb[0].mxu0 %v2266
    %v2437 = vpop.f32.mrb[0].mxu0
    %v2438 = vadd.f32 %v2305, %v2437
    %v2439 = vpop.f32.mrb[0].mxu0
    %v2440 = vpop.f32.mrb[0].mxu0
    %v2441 = vadd.f32 %v2305, %v2440
    %v2442 = vpop.f32.mrb[0].mxu0
    %2443 = vdwg.mxu0
    %2444 = vst [vmem:[%s19] sm:$0xff] %v2438
    %2445 = vst [vmem:[%s19 + $0x8] sm:$0xff] %v2441
    // Predicated region
    $region114: #{nerf_pallas.1} parent=1 // pred_check
      _
    $region115: #{nerf_pallas.1} parent=1 // pred_check_branch
      %2447 = sbr.rel (0) target = $region117
    $region116: #{nerf_pallas.1} parent=1 // pred_region
      _
    $region117: #{nerf_pallas.1} parent=1 // pred_fallthru
      _
    // Predicated region
    $region118: #{nerf_pallas.1} parent=1 // pred_check
      _
    $region119: #{nerf_pallas.1} parent=1 // pred_check_branch
      %2449 = sbr.rel (0) target = $region121
    $region120: #{nerf_pallas.1} parent=1 // pred_region
      _
    $region121: #{nerf_pallas.1} parent=1 // pred_fallthru
      _
    %2450 = vsyncpa [#allocation3], 1
    %2451 = vsyncpa [#allocation5], 1
    %2452 = vsyncpa [#allocation8], 1
    %2453 = vsyncpa [#allocation11], 1
    %2454 = vsyncpa [#allocation14], 1

</llo_original>
